<compile_context>
chip_gen: v6e
topology: v6e:2x2x1
jax: 0.10.0
libtpu: 0.0.40
codegen_flags: <defaults>
</compile_context>

<pallas_src>
import math
import functools

import jax
import jax.numpy as jnp
from jax import lax
from jax.experimental import pallas as pl
from jax.experimental.pallas import tpu as pltpu


def _vmem_limit_bytes():
    """Generation-aware scoped-VMEM limit: ~3/4 of physical VMEM, capped at 96 MiB."""
    try:
        info = pltpu.get_tpu_info()
        cap = int(getattr(info, "vmem_capacity_bytes", 64 * 1024 * 1024))
    except Exception:
        cap = 64 * 1024 * 1024  # conservative fallback (covers v7x's 64 MiB per TC)
    return int(min((cap * 3) // 4, 96 * 1024 * 1024))


_VMEM_LIMIT = _vmem_limit_bytes()


def _pick_tile(dim, target, align):
    """Largest `align`-multiple divisor of `dim` that is <= target, else the full dim."""
    if dim <= target:
        return dim
    t = (target // align) * align
    while t >= align:
        if dim % t == 0:
            return t
        t -= align
    return dim


# ---------------------------------------------------------------------------
# Tiled, pipelined Pallas matmul (W_pack / o_proj projections)
# ---------------------------------------------------------------------------
def _matmul_kernel(x_ref, w_ref, o_ref, acc_ref):
    @pl.when(pl.program_id(2) == 0)
    def _init():
        acc_ref[...] = jnp.zeros(acc_ref.shape, acc_ref.dtype)

    # Inputs are already in the module compute dtype (bf16 by default) -> bf16 MXU feeding
    # with an f32 accumulator.
    acc_ref[...] += jnp.dot(x_ref[...], w_ref[...],
                            preferred_element_type=jnp.float32)

    @pl.when(pl.program_id(2) == pl.num_programs(2) - 1)
    def _finalize():
        o_ref[...] = acc_ref[...].astype(o_ref.dtype)


def _matmul_tiles(m, n, k, itemsize, budget):
    """Pick (tm, tn, tk) under a double-buffered VMEM byte budget (generation-aware)."""
    tm_t, tn_t, tk_t = 512, 1024, 1024
    sub_align = 16 if itemsize == 2 else 8  # bf16 sublane packing wants multiples of 16
    tm = tn = tk = None
    for _ in range(8):
        tm = _pick_tile(m, tm_t, sub_align)
        tn = _pick_tile(n, tn_t, 128)
        tk = _pick_tile(k, tk_t, 128)
        # 2x double-buffered inputs + 2x double-buffered output + f32 accumulator
        need = 2 * (tm * tk + tk * tn) * itemsize + 2 * tm * tn * itemsize + tm * tn * 4
        if need <= budget:
            break
        if tk_t >= tn_t and tk_t > 256:
            tk_t //= 2
        elif tn_t > 256:
            tn_t //= 2
        elif tm_t > 64:
            tm_t //= 2
        else:
            break
    return tm, tn, tk


def pallas_matmul(x, w):
    m, k = x.shape
    k2, n = w.shape
    assert k == k2
    tm, tn, tk = _matmul_tiles(m, n, k, x.dtype.itemsize, budget=(_VMEM_LIMIT * 3) // 4)
    grid = (m // tm, n // tn, k // tk)
    cost = pl.CostEstimate(
        flops=2 * m * n * k,
        transcendentals=0,
        bytes_accessed=(m * k + k * n) * x.dtype.itemsize + m * n * x.dtype.itemsize)
    return pl.pallas_call(
        _matmul_kernel,
        out_shape=jax.ShapeDtypeStruct((m, n), x.dtype),
        grid=grid,
        in_specs=[pl.BlockSpec((tm, tk), lambda i, j, kk: (i, kk)),
                  pl.BlockSpec((tk, tn), lambda i, j, kk: (kk, j))],
        out_specs=pl.BlockSpec((tm, tn), lambda i, j, kk: (i, j)),
        scratch_shapes=[pltpu.VMEM((tm, tn), jnp.float32)],
        compiler_params=pltpu.CompilerParams(
            dimension_semantics=("parallel", "parallel", "arbitrary"),
            vmem_limit_bytes=_VMEM_LIMIT),
        cost_estimate=cost,
    )(x, w)


# ---------------------------------------------------------------------------
# Flash-style GQA causal attention with fused RoPE
#   grid = (B, n_kv_heads, q_blocks, kv_blocks); one step processes the whole GQA group
#   (group Q heads) against one KV head's K/V block.
# ---------------------------------------------------------------------------
def _flash_attn_kernel(q_ref, k_ref, v_ref, cosq_ref, sinq_ref, cosk_ref, sink_ref,
                       o_ref, q_rot, m_sc, l_sc, acc_sc, *,
                       group, head_dim, blk_q, blk_k):
    qi = pl.program_id(2)
    ki = pl.program_id(3)
    half = head_dim // 2
    d = head_dim

    def rot_half(x):
        # rotate_half(x) = concat(-x2, x1); plain jnp ops (no pltpu.roll) for portability.
        return jnp.concatenate([-x[:, half:], x[:, :half]], axis=-1)

    @pl.when(ki == 0)
    def _init():
        # Rotate (and, via the pre-scaled cos/sin tables, softmax-scale) Q once per q block.
        cos = cosq_ref[...]
        sin = sinq_ref[...]
        for g in range(group):
            qg = q_ref[:, g * d:(g + 1) * d].astype(jnp.float32)
            q_rot[:, g * d:(g + 1) * d] = (qg * cos + rot_half(qg) * sin).astype(q_rot.dtype)
        m_sc[...] = jnp.full(m_sc.shape, -jnp.inf, dtype=m_sc.dtype)
        l_sc[...] = jnp.zeros(l_sc.shape, l_sc.dtype)
        acc_sc[...] = jnp.zeros(acc_sc.shape, acc_sc.dtype)

    # needs: KV block is not entirely above the causal diagonal (otherwise skipped entirely).
    # diag : KV block straddles the diagonal and therefore needs an explicit mask.
    needs = ki * blk_k < (qi + 1) * blk_q
    diag = (ki + 1) * blk_k - 1 > qi * blk_q

    def process(masked):
        # Rotate the streamed K tile inline (tiny VPU work, hidden under the K/V DMA).
        kf = k_ref[...].astype(jnp.float32)
        k_rot = (kf * cosk_ref[...] + rot_half(kf) * sink_ref[...]).astype(k_ref.dtype)
        v = v_ref[...]
        if masked:
            row = qi * blk_q + lax.broadcasted_iota(jnp.int32, (blk_q, blk_k), 0)
            col = ki * blk_k + lax.broadcasted_iota(jnp.int32, (blk_q, blk_k), 1)
            keep = col <= row
        for g in range(group):
            qg = q_rot[:, g * d:(g + 1) * d]
            # Contract the last dims of Q and K (no explicit K transpose before the MXU);
            # softmax scale is already folded into qg via the pre-scaled cos/sin.
            s = lax.dot_general(qg, k_rot, (((1,), (1,)), ((), ())),
                                preferred_element_type=jnp.float32)
            if masked:
                s = jnp.where(keep, s, -1e30)
            m_prev = m_sc[g]
            m_new = jnp.maximum(m_prev, jnp.max(s, axis=-1, keepdims=True))
            alpha = jnp.exp(m_prev - m_new)
            p = jnp.exp(s - m_new)
            l_sc[g] = alpha * l_sc[g] + jnp.sum(p, axis=-1, keepdims=True)
            acc_sc[g] = alpha * acc_sc[g] + jnp.dot(p.astype(v.dtype), v,
                                                    preferred_element_type=jnp.float32)
            m_sc[g] = m_new

    @pl.when(jnp.logical_and(needs, jnp.logical_not(diag)))
    def _unmasked():
        process(False)

    @pl.when(jnp.logical_and(needs, diag))
    def _masked():
        process(True)

    @pl.when(ki == pl.num_programs(3) - 1)
    def _finalize():
        for g in range(group):
            # Exact divide (runs once per q block) per the accuracy note on approx reciprocal.
            o_ref[:, g * d:(g + 1) * d] = (acc_sc[g] / l_sc[g]).astype(o_ref.dtype)


def pallas_flash_attention(qkv, cos_q, sin_q, cos_k, sin_k, *, n_heads, n_kv_heads,
                           head_dim, blk_q=512, blk_k=256):
    b, s, _ = qkv.shape
    group = n_heads // n_kv_heads
    hidden = n_heads * head_dim
    blk_q = _pick_tile(s, blk_q, 8)
    blk_k = _pick_tile(s, blk_k, 8)
    grid = (b, n_kv_heads, s // blk_q, s // blk_k)

    def kv_blk(qi, ki):
        # For fully-masked (skipped) KV blocks, clamp to the last useful block so the pipeline
        # does not issue a wasted DMA.
        return jnp.minimum(ki, ((qi + 1) * blk_q - 1) // blk_k)

    def q_map(bi, kvi, qi, ki):
        return (bi, qi, kvi)                                    # group*d Q columns of this group

    def k_map(bi, kvi, qi, ki):
        return (bi, kv_blk(qi, ki), n_heads + kvi)              # K head column block

    def v_map(bi, kvi, qi, ki):
        return (bi, kv_blk(qi, ki), n_heads + n_kv_heads + kvi)  # V head column block

    def rq_map(bi, kvi, qi, ki):
        return (qi, 0)

    def rk_map(bi, kvi, qi, ki):
        return (kv_blk(qi, ki), 0)

    def o_map(bi, kvi, qi, ki):
        return (bi, qi, kvi)

    kernel = functools.partial(_flash_attn_kernel, group=group, head_dim=head_dim,
                               blk_q=blk_q, blk_k=blk_k)
    return pl.pallas_call(
        kernel,
        out_shape=jax.ShapeDtypeStruct((b, s, hidden), qkv.dtype),
        grid=grid,
        in_specs=[
            pl.BlockSpec((None, blk_q, group * head_dim), q_map),
            pl.BlockSpec((None, blk_k, head_dim), k_map),
            pl.BlockSpec((None, blk_k, head_dim), v_map),
            pl.BlockSpec((blk_q, head_dim), rq_map),   # cos (Q rows, pre-scaled by 1/sqrt(d))
            pl.BlockSpec((blk_q, head_dim), rq_map),   # sin (Q rows, pre-scaled by 1/sqrt(d))
            pl.BlockSpec((blk_k, head_dim), rk_map),   # cos (K rows)
            pl.BlockSpec((blk_k, head_dim), rk_map),   # sin (K rows)
        ],
        out_specs=pl.BlockSpec((None, blk_q, group * head_dim), o_map),
        scratch_shapes=[
            pltpu.VMEM((blk_q, group * head_dim), qkv.dtype),        # rotated/scaled Q
            pltpu.VMEM((group, blk_q, 1), jnp.float32),              # m (running max)
            pltpu.VMEM((group, blk_q, 1), jnp.float32),              # l (running denom)
            pltpu.VMEM((group, blk_q, head_dim), jnp.float32),       # acc
        ],
        compiler_params=pltpu.CompilerParams(
            dimension_semantics=("parallel", "parallel", "parallel", "arbitrary"),
            vmem_limit_bytes=_VMEM_LIMIT),
    )(qkv, qkv, qkv, cos_q, sin_q, cos_k, sin_k)
    # TODO(synk): a triangular (qi,ki) schedule via PrefetchScalarGridSpec would remove the
    # ~2x wasted grid steps above the causal diagonal (only step overhead remains today).


# ---------------------------------------------------------------------------
# Module equivalent of MistralQuantAttentionFused (no past_key_value, no padding)
# ---------------------------------------------------------------------------
class MistralQuantAttentionFusedPallas:
    def __init__(self, hidden_size, n_heads, n_kv_heads, max_seq_len,
                 rope_theta=10000.0, compute_dtype=jnp.bfloat16, key=None):
        self.hidden_size = hidden_size
        self.num_heads = n_heads
        self.num_kv_heads = n_kv_heads
        self.head_dim = hidden_size // n_heads
        assert self.head_dim * n_heads == hidden_size
        assert n_heads % n_kv_heads == 0
        # Per-head column blocks must be lane-dense (multiples of 128). Mistral head_dim=128.
        assert self.head_dim % 128 == 0, "head_dim must be a multiple of 128"
        self.num_key_value_groups = n_heads // n_kv_heads
        self.max_seq_len = max_seq_len
        self.rope_theta = rope_theta
        self.compute_dtype = compute_dtype

        kq, ko = jax.random.split(key)
        qkv_out = (n_heads + 2 * n_kv_heads) * self.head_dim
        # deterministic synthetic weights (W_pack and o_proj, bias-free as in Mistral)
        # TODO(synk): the MixQ quantized GEMM (MixGemmCache) path is replaced by dense matmuls.
        self.w_qkv = (jax.random.normal(kq, (hidden_size, qkv_out), jnp.float32)
                      * (1.0 / math.sqrt(hidden_size))).astype(compute_dtype)
        self.w_o = (jax.random.normal(ko, (hidden_size, hidden_size), jnp.float32)
                    * (1.0 / math.sqrt(hidden_size))).astype(compute_dtype)

        # MistralRotaryEmbedding cos/sin cache (kept in f32).
        inv_freq = 1.0 / (rope_theta ** (
            jnp.arange(0, self.head_dim, 2, dtype=jnp.float32) / self.head_dim))
        t = jnp.arange(max_seq_len, dtype=jnp.float32)
        freqs = jnp.einsum("i,j->ij", t, inv_freq)
        emb = jnp.concatenate([freqs, freqs], axis=-1)
        self.cos_cached = jnp.cos(emb)
        self.sin_cached = jnp.sin(emb)
        # Fold the flash-attn softmax scale 1/sqrt(d) into the Q-side RoPE tables
        # (scaling commutes with the rotation), so the attention inner loop never scales scores.
        scale = 1.0 / math.sqrt(self.head_dim)
        self.cos_q_cached = self.cos_cached * scale
        self.sin_q_cached = self.sin_cached * scale

    def __call__(self, hidden_states, position_ids):
        b, s, h = hidden_states.shape
        d = self.head_dim
        nh, nkv = self.num_heads, self.num_kv_heads

        x2d = hidden_states.reshape(b * s, h).astype(self.compute_dtype)

        # W_pack projection (tiled Pallas matmul) -> packed (b, s, (nh+2*nkv)*d) slab.
        qkv = pallas_matmul(x2d, self.w_qkv).reshape(b, s, (nh + 2 * nkv) * d)

        # position_ids are identical across the batch here (no KV cache, no padding).
        # TODO(synk): support per-batch position_ids if a KV cache / left padding is added.
        pos = position_ids[0]
        cos_k = self.cos_cached[pos]
        sin_k = self.sin_cached[pos]
        cos_q = self.cos_q_cached[pos]   # pre-scaled by 1/sqrt(d)
        sin_q = self.sin_q_cached[pos]   # pre-scaled by 1/sqrt(d)

        # Fused RoPE + GQA causal flash attention. K/V sharing across the group is handled by the
        # grid/index_map (no repeat_kv, K/V read once per group); output is written lane-dense
        # straight into the (b, s, hidden) layout o_proj expects.
        # TODO(synk): sliding-window mask (config.sliding_window=4096) is a no-op while
        # kv_seq_len <= window, so only the causal mask is applied.
        attn = pallas_flash_attention(qkv, cos_q, sin_q, cos_k, sin_k,
                                      n_heads=nh, n_kv_heads=nkv, head_dim=d)

        out = pallas_matmul(attn.reshape(b * s, h), self.w_o)
        return out.reshape(b, s, h).astype(hidden_states.dtype)


# ---------------------------------------------------------------------------
# Pure-JAX reference (mirrors the PyTorch forward) for verification
# ---------------------------------------------------------------------------
def reference_forward(m, hidden_states, position_ids):
    b, s, h = hidden_states.shape
    d = m.head_dim
    x = hidden_states.reshape(b * s, h).astype(jnp.float32)
    w_qkv = m.w_qkv.astype(jnp.float32)
    w_o = m.w_o.astype(jnp.float32)
    qkv = (x @ w_qkv).reshape(b, s, m.num_heads + 2 * m.num_kv_heads, d)
    xq = qkv[:, :, :m.num_heads]
    xk = qkv[:, :, m.num_heads:m.num_heads + m.num_kv_heads]
    xv = qkv[:, :, m.num_heads + m.num_kv_heads:]
    q = jnp.transpose(xq, (0, 2, 1, 3))
    k = jnp.transpose(xk, (0, 2, 1, 3))
    v = jnp.transpose(xv, (0, 2, 1, 3))

    cos = m.cos_cached[position_ids][:, None, :, :]
    sin = m.sin_cached[position_ids][:, None, :, :]

    def rotate_half(t):
        d2 = t.shape[-1] // 2
        return jnp.concatenate([-t[..., d2:], t[..., :d2]], axis=-1)

    q = q * cos + rotate_half(q) * sin
    k = k * cos + rotate_half(k) * sin

    k = jnp.repeat(k, m.num_key_value_groups, axis=1)
    v = jnp.repeat(v, m.num_key_value_groups, axis=1)

    scale = 1.0 / math.sqrt(d)
    sc = jnp.einsum("bhqd,bhkd->bhqk", q, k) * scale
    mask = jnp.tril(jnp.ones((s, s), dtype=bool))
    sc = jnp.where(mask, sc, -jnp.inf)
    p = jax.nn.softmax(sc, axis=-1)
    o = jnp.einsum("bhqk,bhkd->bhqd", p, v)
    o = jnp.transpose(o, (0, 2, 1, 3)).reshape(b * s, h)
    return (o @ w_o).reshape(b, s, h)


if __name__ == "__main__":
    # Small shapes consistent with the module (real Mistral head_dim=128 kept so the lane-dense
    # per-head column blocking and the GQA-group Q/output blocks are exercised).
    batch = 2
    seq = 16
    n_heads = 4
    n_kv_heads = 2
    head_dim = 128
    hidden = n_heads * head_dim      # 512
    max_seq_len = 32

    root = jax.random.PRNGKey(0)
    k_w, k_x = jax.random.split(root)

    hidden_states = jax.random.normal(k_x, (batch, seq, hidden), jnp.float32)
    position_ids = jnp.broadcast_to(jnp.arange(seq, dtype=jnp.int32)[None, :], (batch, seq))

    # f32 compute path: tight correctness check against the pure-JAX reference.
    attn_f32 = MistralQuantAttentionFusedPallas(
        hidden_size=hidden, n_heads=n_heads, n_kv_heads=n_kv_heads,
        max_seq_len=max_seq_len, rope_theta=10000.0,
        compute_dtype=jnp.float32, key=k_w)
    out = jax.block_until_ready(attn_f32(hidden_states, position_ids))
    ref = reference_forward(attn_f32, hidden_states, position_ids)
    assert out.shape == (batch, seq, hidden)
    assert jnp.allclose(out, ref, atol=3e-3, rtol=3e-3), float(jnp.max(jnp.abs(out - ref)))

    # bf16 compute path (default, MXU-friendly on all generations): looser numerical check.
    attn_bf16 = MistralQuantAttentionFusedPallas(
        hidden_size=hidden, n_heads=n_heads, n_kv_heads=n_kv_heads,
        max_seq_len=max_seq_len, rope_theta=10000.0,
        compute_dtype=jnp.bfloat16, key=k_w)
    out_bf = jax.block_until_ready(attn_bf16(hidden_states, position_ids))
    ref_bf = reference_forward(attn_bf16, hidden_states, position_ids)
    assert out_bf.shape == (batch, seq, hidden)
    assert bool(jnp.all(jnp.isfinite(out_bf)))
    assert jnp.allclose(out_bf, ref_bf, atol=2e-1, rtol=2e-1), \
        float(jnp.max(jnp.abs(out_bf - ref_bf)))

    print("KERNEL_OK")
</pallas_src>

<mosaic_0001>
module attributes {stable_mosaic.version = 11 : i64} {
  func.func @_matmul_kernel(%arg0: i32, %arg1: i32, %arg2: i32, %arg3: memref<32x512xf32, #tpu.memory_space<vmem>>, %arg4: memref<512x1024xf32, #tpu.memory_space<vmem>>, %arg5: memref<32x1024xf32, #tpu.memory_space<vmem>>, %arg6: memref<32x1024xf32, #tpu.memory_space<vmem>>) attributes {dimension_semantics = [#tpu.dimension_semantics<parallel>, #tpu.dimension_semantics<parallel>, #tpu.dimension_semantics<arbitrary>], iteration_bounds = array<i64: 1, 1, 1>, scalar_prefetch = 0 : i64, scratch_operands = 1 : i64, tpu.core_type = #tpu.core_type<tc>, window_params = [{transform_indices = @transform_0, window_bounds = array<i64: 32, 512>}, {transform_indices = @transform_1, window_bounds = array<i64: 512, 1024>}, {transform_indices = @transform_2, window_bounds = array<i64: 32, 1024>}]} {
    %c0_i32 = arith.constant 0 : i32
    %0 = arith.cmpi eq, %arg2, %c0_i32 : i32
    %1 = arith.extui %0 : i1 to i32
    %c0_i32_0 = arith.constant 0 : i32
    %2 = arith.cmpi ne, %1, %c0_i32_0 : i32
    scf.if %2 {
      %cst_10 = arith.constant 0.000000e+00 : f32
      %12 = vector.broadcast %cst_10 : f32 to vector<32x1024xf32>
      %c0_11 = arith.constant 0 : index
      %c0_12 = arith.constant 0 : index
      %13 = vector.load %arg6[%c0_11, %c0_12] : memref<32x1024xf32, #tpu.memory_space<vmem>>, vector<32x1024xf32>
      tpu.vector_store %arg6[%c0_11, %c0_12], %12 {strides = array<i32>} : memref<32x1024xf32, #tpu.memory_space<vmem>>, vector<32x1024xf32>,
    } else {
    }
    %c0 = arith.constant 0 : index
    %c0_1 = arith.constant 0 : index
    %3 = vector.load %arg6[%c0, %c0_1] : memref<32x1024xf32, #tpu.memory_space<vmem>>, vector<32x1024xf32>
    %c0_2 = arith.constant 0 : index
    %c0_3 = arith.constant 0 : index
    %4 = vector.load %arg3[%c0_2, %c0_3] : memref<32x512xf32, #tpu.memory_space<vmem>>, vector<32x512xf32>
    %c0_4 = arith.constant 0 : index
    %c0_5 = arith.constant 0 : index
    %5 = vector.load %arg4[%c0_4, %c0_5] : memref<512x1024xf32, #tpu.memory_space<vmem>>, vector<512x1024xf32>
    %cst = arith.constant dense<0.000000e+00> : vector<32x1024xf32>
    %6 = tpu.matmul %4, %5, %cst {dimension_numbers = #tpu.dot_dimension_numbers<[1], [0], [0], [1], [0, 0, 1, 1], [], []>} : vector<32x512xf32>, vector<512x1024xf32>, vector<32x1024xf32> -> vector<32x1024xf32>
    %7 = arith.addf %3, %6 : vector<32x1024xf32>
    %c0_6 = arith.constant 0 : index
    %c0_7 = arith.constant 0 : index
    %8 = vector.load %arg6[%c0_6, %c0_7] : memref<32x1024xf32, #tpu.memory_space<vmem>>, vector<32x1024xf32>
    tpu.vector_store %arg6[%c0_6, %c0_7], %7 {strides = array<i32>} : memref<32x1024xf32, #tpu.memory_space<vmem>>, vector<32x1024xf32>,
    %c0_i32_8 = arith.constant 0 : i32
    %9 = arith.cmpi eq, %arg2, %c0_i32_8 : i32
    %10 = arith.extui %9 : i1 to i32
    %c0_i32_9 = arith.constant 0 : i32
    %11 = arith.cmpi ne, %10, %c0_i32_9 : i32
    scf.if %11 {
      %c0_10 = arith.constant 0 : index
      %c0_11 = arith.constant 0 : index
      %12 = vector.load %arg6[%c0_10, %c0_11] : memref<32x1024xf32, #tpu.memory_space<vmem>>, vector<32x1024xf32>
      %c0_12 = arith.constant 0 : index
      %c0_13 = arith.constant 0 : index
      %13 = vector.load %arg5[%c0_12, %c0_13] : memref<32x1024xf32, #tpu.memory_space<vmem>>, vector<32x1024xf32>
      tpu.vector_store %arg5[%c0_12, %c0_13], %12 {strides = array<i32>} : memref<32x1024xf32, #tpu.memory_space<vmem>>, vector<32x1024xf32>,
    } else {
    }
    return
  }
  func.func @transform_0(%arg0: i32, %arg1: i32, %arg2: i32) -> (i32, i32) {
    %c0_i32 = arith.constant 0 : i32
    return %arg0, %arg2 : i32, i32
  }
  func.func @transform_1(%arg0: i32, %arg1: i32, %arg2: i32) -> (i32, i32) {
    %c0_i32 = arith.constant 0 : i32
    return %arg2, %arg1 : i32, i32
  }
  func.func @transform_2(%arg0: i32, %arg1: i32, %arg2: i32) -> (i32, i32) {
    %c0_i32 = arith.constant 0 : i32
    return %arg0, %arg1 : i32, i32
  }
}

</mosaic_0001>

<llo_original>
// kernel: tpu_custom_call.1
$region0: #{tpu_custom_call.1}
  #allocation0 [shape = 'u32[]', space=smem, size = 0x4, offset = 0x4, fixed_abs, tag = 'smem constant byte address 0x4 - core index']
  #allocation1 [shape = 'u32[144,128]{1,0:T(1,128)}', space=vmem, size = 0x12000, scoped, tag = 'internal scratch']
  #allocation2 [shape = 'f32[32,1024]{1,0:T(8,128)}', space=vmem, size = 0x20000, scoped, tag = 'scratch operand']
  %s0 = inlined_call_operand.hbm [shape: f32[32,512], index: 0, kind: input, shape index: {}]
  %s1 = inlined_call_operand.hbm [shape: f32[512,1024], index: 1, kind: input, shape index: {}]
  %s2 = inlined_call_operand.hbm [shape: f32[32,1024], index: 2, kind: output, shape index: {}]
  %s3 = sld [smem:[#allocation0]]
  $region34: #{tpu_custom_call.1} parent=0
    _
  %s5 = ssub.s32 1, %s3
  %s6 = scalar_select 0, %s5, %s3
  $region1: #{tpu_custom_call.1} parent=0
    #allocation3 [shape = 'u8[65536]{0}', space=vmem, size = 0x10000, scoped, tag = 'input window, operand 0, single buffered']
    #allocation4 [shape = 's32[1]{0}', space=sflag, size = 0x4, scoped, tag = 'scoped memory for tpu_custom_call.1']
    #allocation5 [shape = 's32[1]{0}', space=sflag, size = 0x4, scoped, tag = 'scoped memory for tpu_custom_call.1']
    #allocation6 [shape = 'u8[2097152]{0}', space=vmem, size = 0x200000, scoped, tag = 'input window, operand 1, single buffered']
    #allocation7 [shape = 's32[1]{0}', space=sflag, size = 0x4, scoped, tag = 'scoped memory for tpu_custom_call.1']
    #allocation8 [shape = 'u8[131072]{0}', space=vmem, size = 0x20000, scoped, tag = 'output window, operand 0, single buffered']
    %7 = vsyncpa [#allocation4], 0
    %8 = vsyncpa [#allocation7], 0
    %9 = vsyncpa [#allocation5], 0
    // Predicated region
    $region2: #{tpu_custom_call.1} parent=1 // pred_check
      _
    $region3: #{tpu_custom_call.1} parent=1 // pred_check_branch
      %11 = sbr.rel (0) target = $region5
    $region4: #{tpu_custom_call.1} parent=1 // pred_region
      %s13 = ssub.s32 2048, 2048
      %14 = vsyncadd [#allocation4], %s13
      %s15 = sshll.u32 [#allocation3], 4
      %s16 = int_to_ptr.vmem [resolvable:$true] %s15
      %21 = dma.hbm_to_vmem [thread:$0]  %s0, 2048, %s16, [#allocation4], 512, 512, 32
    $region5: #{tpu_custom_call.1} parent=1 // pred_fallthru
      _
    // Predicated region
    $region6: #{tpu_custom_call.1} parent=1 // pred_check
      _
    $region7: #{tpu_custom_call.1} parent=1 // pred_check_branch
      %23 = sbr.rel (0) target = $region9
    $region8: #{tpu_custom_call.1} parent=1 // pred_region
      %s25 = ssub.s32 65536, 65536
      %26 = vsyncadd [#allocation7], %s25
      %s27 = sshll.u32 [#allocation6], 4
      %s28 = int_to_ptr.vmem [resolvable:$true] %s27
      %33 = dma.hbm_to_vmem [thread:$0]  %s1, 65536, %s28, [#allocation7], 1024, 1024, 64
    $region9: #{tpu_custom_call.1} parent=1 // pred_fallthru
      _
    // Predicated region
    $region10: #{tpu_custom_call.1} parent=1 // pred_check
      _
    $region11: #{tpu_custom_call.1} parent=1 // pred_check_branch
      %35 = sbr.rel (0) target = $region13
    $region12: #{tpu_custom_call.1} parent=1 // pred_region
      %36 = dma.done [#allocation4], 2048
    $region13: #{tpu_custom_call.1} parent=1 // pred_fallthru
      _
    // Predicated region
    $region14: #{tpu_custom_call.1} parent=1 // pred_check
      _
    $region15: #{tpu_custom_call.1} parent=1 // pred_check_branch
      %38 = sbr.rel (0) target = $region17
    $region16: #{tpu_custom_call.1} parent=1 // pred_region
      %39 = dma.done [#allocation7], 65536
    $region17: #{tpu_custom_call.1} parent=1 // pred_fallthru
      _
    %p40 = scmp.eq.s32.totalorder 0, 0
    // Predicated region
    $region18: #{tpu_custom_call.1} parent=1 // pred_check
      %p41 = pneg %p40
    $region19: #{tpu_custom_call.1} parent=1 // pred_check_branch
      %43 = sbr.rel (%p41) target = $region21
    $region20: #{tpu_custom_call.1} parent=1 // pred_region
      %44 = vst [vmem:[#allocation2] sm:$0xff] 0.0
      %45 = vst [vmem:[#allocation2 + $0x8] sm:$0xff] 0.0
      %46 = vst [vmem:[#allocation2 + $0x10] sm:$0xff] 0.0
      %47 = vst [vmem:[#allocation2 + $0x18] sm:$0xff] 0.0
      %48 = vst [vmem:[#allocation2 + $0x20] sm:$0xff] 0.0
      %49 = vst [vmem:[#allocation2 + $0x28] sm:$0xff] 0.0
      %50 = vst [vmem:[#allocation2 + $0x30] sm:$0xff] 0.0
      %51 = vst [vmem:[#allocation2 + $0x38] sm:$0xff] 0.0
      %52 = vst [vmem:[#allocation2 + $0x40] sm:$0xff] 0.0
      %53 = vst [vmem:[#allocation2 + $0x48] sm:$0xff] 0.0
      %54 = vst [vmem:[#allocation2 + $0x50] sm:$0xff] 0.0
      %55 = vst [vmem:[#allocation2 + $0x58] sm:$0xff] 0.0
      %56 = vst [vmem:[#allocation2 + $0x60] sm:$0xff] 0.0
      %57 = vst [vmem:[#allocation2 + $0x68] sm:$0xff] 0.0
      %58 = vst [vmem:[#allocation2 + $0x70] sm:$0xff] 0.0
      %59 = vst [vmem:[#allocation2 + $0x78] sm:$0xff] 0.0
      %60 = vst [vmem:[#allocation2 + $0x80] sm:$0xff] 0.0
      %61 = vst [vmem:[#allocation2 + $0x88] sm:$0xff] 0.0
      %62 = vst [vmem:[#allocation2 + $0x90] sm:$0xff] 0.0
      %63 = vst [vmem:[#allocation2 + $0x98] sm:$0xff] 0.0
      %64 = vst [vmem:[#allocation2 + $0xa0] sm:$0xff] 0.0
      %65 = vst [vmem:[#allocation2 + $0xa8] sm:$0xff] 0.0
      %66 = vst [vmem:[#allocation2 + $0xb0] sm:$0xff] 0.0
      %67 = vst [vmem:[#allocation2 + $0xb8] sm:$0xff] 0.0
      %68 = vst [vmem:[#allocation2 + $0xc0] sm:$0xff] 0.0
      %69 = vst [vmem:[#allocation2 + $0xc8] sm:$0xff] 0.0
      %70 = vst [vmem:[#allocation2 + $0xd0] sm:$0xff] 0.0
      %71 = vst [vmem:[#allocation2 + $0xd8] sm:$0xff] 0.0
      %72 = vst [vmem:[#allocation2 + $0xe0] sm:$0xff] 0.0
      %73 = vst [vmem:[#allocation2 + $0xe8] sm:$0xff] 0.0
      %74 = vst [vmem:[#allocation2 + $0xf0] sm:$0xff] 0.0
      %75 = vst [vmem:[#allocation2 + $0xf8] sm:$0xff] 0.0
    $region21: #{tpu_custom_call.1} parent=1 // pred_fallthru
      _
    %v76 = vld [vmem:[#allocation2] sm:$0xff]
    %v77 = vld [vmem:[#allocation2 + $0x8] sm:$0xff]
    %v78 = vld [vmem:[#allocation2 + $0x10] sm:$0xff]
    %v79 = vld [vmem:[#allocation2 + $0x18] sm:$0xff]
    %v80 = vld [vmem:[#allocation2 + $0x20] sm:$0xff]
    %v81 = vld [vmem:[#allocation2 + $0x28] sm:$0xff]
    %v82 = vld [vmem:[#allocation2 + $0x30] sm:$0xff]
    %v83 = vld [vmem:[#allocation2 + $0x38] sm:$0xff]
    %v84 = vld [vmem:[#allocation2 + $0x40] sm:$0xff]
    %v85 = vld [vmem:[#allocation2 + $0x48] sm:$0xff]
    %v86 = vld [vmem:[#allocation2 + $0x50] sm:$0xff]
    %v87 = vld [vmem:[#allocation2 + $0x58] sm:$0xff]
    %v88 = vld [vmem:[#allocation2 + $0x60] sm:$0xff]
    %v89 = vld [vmem:[#allocation2 + $0x68] sm:$0xff]
    %v90 = vld [vmem:[#allocation2 + $0x70] sm:$0xff]
    %v91 = vld [vmem:[#allocation2 + $0x78] sm:$0xff]
    %v92 = vld [vmem:[#allocation2 + $0x80] sm:$0xff]
    %v93 = vld [vmem:[#allocation2 + $0x88] sm:$0xff]
    %v94 = vld [vmem:[#allocation2 + $0x90] sm:$0xff]
    %v95 = vld [vmem:[#allocation2 + $0x98] sm:$0xff]
    %v96 = vld [vmem:[#allocation2 + $0xa0] sm:$0xff]
    %v97 = vld [vmem:[#allocation2 + $0xa8] sm:$0xff]
    %v98 = vld [vmem:[#allocation2 + $0xb0] sm:$0xff]
    %v99 = vld [vmem:[#allocation2 + $0xb8] sm:$0xff]
    %v100 = vld [vmem:[#allocation2 + $0xc0] sm:$0xff]
    %v101 = vld [vmem:[#allocation2 + $0xc8] sm:$0xff]
    %v102 = vld [vmem:[#allocation2 + $0xd0] sm:$0xff]
    %v103 = vld [vmem:[#allocation2 + $0xd8] sm:$0xff]
    %v104 = vld [vmem:[#allocation2 + $0xe0] sm:$0xff]
    %v105 = vld [vmem:[#allocation2 + $0xe8] sm:$0xff]
    %v106 = vld [vmem:[#allocation2 + $0xf0] sm:$0xff]
    %v107 = vld [vmem:[#allocation2 + $0xf8] sm:$0xff]
    %v108 = vld [vmem:[#allocation3] sm:$0xff]
    %v109 = vld [vmem:[#allocation3 + $0x8] sm:$0xff]
    %v110 = vld [vmem:[#allocation3 + $0x10] sm:$0xff]
    %v111 = vld [vmem:[#allocation3 + $0x18] sm:$0xff]
    %v112 = vld [vmem:[#allocation3 + $0x20] sm:$0xff]
    %v113 = vld [vmem:[#allocation3 + $0x28] sm:$0xff]
    %v114 = vld [vmem:[#allocation3 + $0x30] sm:$0xff]
    %v115 = vld [vmem:[#allocation3 + $0x38] sm:$0xff]
    %v116 = vld [vmem:[#allocation3 + $0x40] sm:$0xff]
    %v117 = vld [vmem:[#allocation3 + $0x48] sm:$0xff]
    %v118 = vld [vmem:[#allocation3 + $0x50] sm:$0xff]
    %v119 = vld [vmem:[#allocation3 + $0x58] sm:$0xff]
    %v120 = vld [vmem:[#allocation3 + $0x60] sm:$0xff]
    %v121 = vld [vmem:[#allocation3 + $0x68] sm:$0xff]
    %v122 = vld [vmem:[#allocation3 + $0x70] sm:$0xff]
    %v123 = vld [vmem:[#allocation3 + $0x78] sm:$0xff]
    %v124 = vld [vmem:[#allocation6] sm:$0xff]
    %v125 = vld [vmem:[#allocation6 + $0x8] sm:$0xff]
    %v126 = vld [vmem:[#allocation6 + $0x10] sm:$0xff]
    %v127 = vld [vmem:[#allocation6 + $0x18] sm:$0xff]
    %v128 = vld [vmem:[#allocation6 + $0x20] sm:$0xff]
    %v129 = vld [vmem:[#allocation6 + $0x28] sm:$0xff]
    %v130 = vld [vmem:[#allocation6 + $0x30] sm:$0xff]
    %v131 = vld [vmem:[#allocation6 + $0x38] sm:$0xff]
    %v132 = vld [vmem:[#allocation6 + $0x40] sm:$0xff]
    %v133 = vld [vmem:[#allocation6 + $0x48] sm:$0xff]
    %v134 = vld [vmem:[#allocation6 + $0x50] sm:$0xff]
    %v135 = vld [vmem:[#allocation6 + $0x58] sm:$0xff]
    %v136 = vld [vmem:[#allocation6 + $0x60] sm:$0xff]
    %v137 = vld [vmem:[#allocation6 + $0x68] sm:$0xff]
    %v138 = vld [vmem:[#allocation6 + $0x70] sm:$0xff]
    %v139 = vld [vmem:[#allocation6 + $0x78] sm:$0xff]
    %v140 = vld [vmem:[#allocation6 + $0x80] sm:$0xff]
    %v141 = vld [vmem:[#allocation6 + $0x88] sm:$0xff]
    %v142 = vld [vmem:[#allocation6 + $0x90] sm:$0xff]
    %v143 = vld [vmem:[#allocation6 + $0x98] sm:$0xff]
    %v144 = vld [vmem:[#allocation6 + $0xa0] sm:$0xff]
    %v145 = vld [vmem:[#allocation6 + $0xa8] sm:$0xff]
    %v146 = vld [vmem:[#allocation6 + $0xb0] sm:$0xff]
    %v147 = vld [vmem:[#allocation6 + $0xb8] sm:$0xff]
    %v148 = vld [vmem:[#allocation6 + $0xc0] sm:$0xff]
    %v149 = vld [vmem:[#allocation6 + $0xc8] sm:$0xff]
    %v150 = vld [vmem:[#allocation6 + $0xd0] sm:$0xff]
    %v151 = vld [vmem:[#allocation6 + $0xd8] sm:$0xff]
    %v152 = vld [vmem:[#allocation6 + $0xe0] sm:$0xff]
    %v153 = vld [vmem:[#allocation6 + $0xe8] sm:$0xff]
    %v154 = vld [vmem:[#allocation6 + $0xf0] sm:$0xff]
    %v155 = vld [vmem:[#allocation6 + $0xf8] sm:$0xff]
    %v156 = vld [vmem:[#allocation6 + $0x100] sm:$0xff]
    %v157 = vld [vmem:[#allocation6 + $0x108] sm:$0xff]
    %v158 = vld [vmem:[#allocation6 + $0x110] sm:$0xff]
    %v159 = vld [vmem:[#allocation6 + $0x118] sm:$0xff]
    %v160 = vld [vmem:[#allocation6 + $0x120] sm:$0xff]
    %v161 = vld [vmem:[#allocation6 + $0x128] sm:$0xff]
    %v162 = vld [vmem:[#allocation6 + $0x130] sm:$0xff]
    %v163 = vld [vmem:[#allocation6 + $0x138] sm:$0xff]
    %v164 = vld [vmem:[#allocation6 + $0x140] sm:$0xff]
    %v165 = vld [vmem:[#allocation6 + $0x148] sm:$0xff]
    %v166 = vld [vmem:[#allocation6 + $0x150] sm:$0xff]
    %v167 = vld [vmem:[#allocation6 + $0x158] sm:$0xff]
    %v168 = vld [vmem:[#allocation6 + $0x160] sm:$0xff]
    %v169 = vld [vmem:[#allocation6 + $0x168] sm:$0xff]
    %v170 = vld [vmem:[#allocation6 + $0x170] sm:$0xff]
    %v171 = vld [vmem:[#allocation6 + $0x178] sm:$0xff]
    %v172 = vld [vmem:[#allocation6 + $0x180] sm:$0xff]
    %v173 = vld [vmem:[#allocation6 + $0x188] sm:$0xff]
    %v174 = vld [vmem:[#allocation6 + $0x190] sm:$0xff]
    %v175 = vld [vmem:[#allocation6 + $0x198] sm:$0xff]
    %v176 = vld [vmem:[#allocation6 + $0x1a0] sm:$0xff]
    %v177 = vld [vmem:[#allocation6 + $0x1a8] sm:$0xff]
    %v178 = vld [vmem:[#allocation6 + $0x1b0] sm:$0xff]
    %v179 = vld [vmem:[#allocation6 + $0x1b8] sm:$0xff]
    %v180 = vld [vmem:[#allocation6 + $0x1c0] sm:$0xff]
    %v181 = vld [vmem:[#allocation6 + $0x1c8] sm:$0xff]
    %v182 = vld [vmem:[#allocation6 + $0x1d0] sm:$0xff]
    %v183 = vld [vmem:[#allocation6 + $0x1d8] sm:$0xff]
    %v184 = vld [vmem:[#allocation6 + $0x1e0] sm:$0xff]
    %v185 = vld [vmem:[#allocation6 + $0x1e8] sm:$0xff]
    %v186 = vld [vmem:[#allocation6 + $0x1f0] sm:$0xff]
    %v187 = vld [vmem:[#allocation6 + $0x1f8] sm:$0xff]
    %v188 = vld [vmem:[#allocation6 + $0x200] sm:$0xff]
    %v189 = vld [vmem:[#allocation6 + $0x208] sm:$0xff]
    %v190 = vld [vmem:[#allocation6 + $0x210] sm:$0xff]
    %v191 = vld [vmem:[#allocation6 + $0x218] sm:$0xff]
    %v192 = vld [vmem:[#allocation6 + $0x220] sm:$0xff]
    %v193 = vld [vmem:[#allocation6 + $0x228] sm:$0xff]
    %v194 = vld [vmem:[#allocation6 + $0x230] sm:$0xff]
    %v195 = vld [vmem:[#allocation6 + $0x238] sm:$0xff]
    %v196 = vld [vmem:[#allocation6 + $0x240] sm:$0xff]
    %v197 = vld [vmem:[#allocation6 + $0x248] sm:$0xff]
    %v198 = vld [vmem:[#allocation6 + $0x250] sm:$0xff]
    %v199 = vld [vmem:[#allocation6 + $0x258] sm:$0xff]
    %v200 = vld [vmem:[#allocation6 + $0x260] sm:$0xff]
    %v201 = vld [vmem:[#allocation6 + $0x268] sm:$0xff]
    %v202 = vld [vmem:[#allocation6 + $0x270] sm:$0xff]
    %v203 = vld [vmem:[#allocation6 + $0x278] sm:$0xff]
    %v204 = vld [vmem:[#allocation6 + $0x280] sm:$0xff]
    %v205 = vld [vmem:[#allocation6 + $0x288] sm:$0xff]
    %v206 = vld [vmem:[#allocation6 + $0x290] sm:$0xff]
    %v207 = vld [vmem:[#allocation6 + $0x298] sm:$0xff]
    %v208 = vld [vmem:[#allocation6 + $0x2a0] sm:$0xff]
    %v209 = vld [vmem:[#allocation6 + $0x2a8] sm:$0xff]
    %v210 = vld [vmem:[#allocation6 + $0x2b0] sm:$0xff]
    %v211 = vld [vmem:[#allocation6 + $0x2b8] sm:$0xff]
    %v212 = vld [vmem:[#allocation6 + $0x2c0] sm:$0xff]
    %v213 = vld [vmem:[#allocation6 + $0x2c8] sm:$0xff]
    %v214 = vld [vmem:[#allocation6 + $0x2d0] sm:$0xff]
    %v215 = vld [vmem:[#allocation6 + $0x2d8] sm:$0xff]
    %v216 = vld [vmem:[#allocation6 + $0x2e0] sm:$0xff]
    %v217 = vld [vmem:[#allocation6 + $0x2e8] sm:$0xff]
    %v218 = vld [vmem:[#allocation6 + $0x2f0] sm:$0xff]
    %v219 = vld [vmem:[#allocation6 + $0x2f8] sm:$0xff]
    %v220 = vld [vmem:[#allocation6 + $0x300] sm:$0xff]
    %v221 = vld [vmem:[#allocation6 + $0x308] sm:$0xff]
    %v222 = vld [vmem:[#allocation6 + $0x310] sm:$0xff]
    %v223 = vld [vmem:[#allocation6 + $0x318] sm:$0xff]
    %v224 = vld [vmem:[#allocation6 + $0x320] sm:$0xff]
    %v225 = vld [vmem:[#allocation6 + $0x328] sm:$0xff]
    %v226 = vld [vmem:[#allocation6 + $0x330] sm:$0xff]
    %v227 = vld [vmem:[#allocation6 + $0x338] sm:$0xff]
    %v228 = vld [vmem:[#allocation6 + $0x340] sm:$0xff]
    %v229 = vld [vmem:[#allocation6 + $0x348] sm:$0xff]
    %v230 = vld [vmem:[#allocation6 + $0x350] sm:$0xff]
    %v231 = vld [vmem:[#allocation6 + $0x358] sm:$0xff]
    %v232 = vld [vmem:[#allocation6 + $0x360] sm:$0xff]
    %v233 = vld [vmem:[#allocation6 + $0x368] sm:$0xff]
    %v234 = vld [vmem:[#allocation6 + $0x370] sm:$0xff]
    %v235 = vld [vmem:[#allocation6 + $0x378] sm:$0xff]
    %v236 = vld [vmem:[#allocation6 + $0x380] sm:$0xff]
    %v237 = vld [vmem:[#allocation6 + $0x388] sm:$0xff]
    %v238 = vld [vmem:[#allocation6 + $0x390] sm:$0xff]
    %v239 = vld [vmem:[#allocation6 + $0x398] sm:$0xff]
    %v240 = vld [vmem:[#allocation6 + $0x3a0] sm:$0xff]
    %v241 = vld [vmem:[#allocation6 + $0x3a8] sm:$0xff]
    %v242 = vld [vmem:[#allocation6 + $0x3b0] sm:$0xff]
    %v243 = vld [vmem:[#allocation6 + $0x3b8] sm:$0xff]
    %v244 = vld [vmem:[#allocation6 + $0x3c0] sm:$0xff]
    %v245 = vld [vmem:[#allocation6 + $0x3c8] sm:$0xff]
    %v246 = vld [vmem:[#allocation6 + $0x3d0] sm:$0xff]
    %v247 = vld [vmem:[#allocation6 + $0x3d8] sm:$0xff]
    %v248 = vld [vmem:[#allocation6 + $0x3e0] sm:$0xff]
    %v249 = vld [vmem:[#allocation6 + $0x3e8] sm:$0xff]
    %v250 = vld [vmem:[#allocation6 + $0x3f0] sm:$0xff]
    %v251 = vld [vmem:[#allocation6 + $0x3f8] sm:$0xff]
    %v252 = vld [vmem:[#allocation6 + $0x400] sm:$0xff]
    %v253 = vld [vmem:[#allocation6 + $0x408] sm:$0xff]
    %v254 = vld [vmem:[#allocation6 + $0x410] sm:$0xff]
    %v255 = vld [vmem:[#allocation6 + $0x418] sm:$0xff]
    %v256 = vld [vmem:[#allocation6 + $0x420] sm:$0xff]
    %v257 = vld [vmem:[#allocation6 + $0x428] sm:$0xff]
    %v258 = vld [vmem:[#allocation6 + $0x430] sm:$0xff]
    %v259 = vld [vmem:[#allocation6 + $0x438] sm:$0xff]
    %v260 = vld [vmem:[#allocation6 + $0x440] sm:$0xff]
    %v261 = vld [vmem:[#allocation6 + $0x448] sm:$0xff]
    %v262 = vld [vmem:[#allocation6 + $0x450] sm:$0xff]
    %v263 = vld [vmem:[#allocation6 + $0x458] sm:$0xff]
    %v264 = vld [vmem:[#allocation6 + $0x460] sm:$0xff]
    %v265 = vld [vmem:[#allocation6 + $0x468] sm:$0xff]
    %v266 = vld [vmem:[#allocation6 + $0x470] sm:$0xff]
    %v267 = vld [vmem:[#allocation6 + $0x478] sm:$0xff]
    %v268 = vld [vmem:[#allocation6 + $0x480] sm:$0xff]
    %v269 = vld [vmem:[#allocation6 + $0x488] sm:$0xff]
    %v270 = vld [vmem:[#allocation6 + $0x490] sm:$0xff]
    %v271 = vld [vmem:[#allocation6 + $0x498] sm:$0xff]
    %v272 = vld [vmem:[#allocation6 + $0x4a0] sm:$0xff]
    %v273 = vld [vmem:[#allocation6 + $0x4a8] sm:$0xff]
    %v274 = vld [vmem:[#allocation6 + $0x4b0] sm:$0xff]
    %v275 = vld [vmem:[#allocation6 + $0x4b8] sm:$0xff]
    %v276 = vld [vmem:[#allocation6 + $0x4c0] sm:$0xff]
    %v277 = vld [vmem:[#allocation6 + $0x4c8] sm:$0xff]
    %v278 = vld [vmem:[#allocation6 + $0x4d0] sm:$0xff]
    %v279 = vld [vmem:[#allocation6 + $0x4d8] sm:$0xff]
    %v280 = vld [vmem:[#allocation6 + $0x4e0] sm:$0xff]
    %v281 = vld [vmem:[#allocation6 + $0x4e8] sm:$0xff]
    %v282 = vld [vmem:[#allocation6 + $0x4f0] sm:$0xff]
    %v283 = vld [vmem:[#allocation6 + $0x4f8] sm:$0xff]
    %v284 = vld [vmem:[#allocation6 + $0x500] sm:$0xff]
    %v285 = vld [vmem:[#allocation6 + $0x508] sm:$0xff]
    %v286 = vld [vmem:[#allocation6 + $0x510] sm:$0xff]
    %v287 = vld [vmem:[#allocation6 + $0x518] sm:$0xff]
    %v288 = vld [vmem:[#allocation6 + $0x520] sm:$0xff]
    %v289 = vld [vmem:[#allocation6 + $0x528] sm:$0xff]
    %v290 = vld [vmem:[#allocation6 + $0x530] sm:$0xff]
    %v291 = vld [vmem:[#allocation6 + $0x538] sm:$0xff]
    %v292 = vld [vmem:[#allocation6 + $0x540] sm:$0xff]
    %v293 = vld [vmem:[#allocation6 + $0x548] sm:$0xff]
    %v294 = vld [vmem:[#allocation6 + $0x550] sm:$0xff]
    %v295 = vld [vmem:[#allocation6 + $0x558] sm:$0xff]
    %v296 = vld [vmem:[#allocation6 + $0x560] sm:$0xff]
    %v297 = vld [vmem:[#allocation6 + $0x568] sm:$0xff]
    %v298 = vld [vmem:[#allocation6 + $0x570] sm:$0xff]
    %v299 = vld [vmem:[#allocation6 + $0x578] sm:$0xff]
    %v300 = vld [vmem:[#allocation6 + $0x580] sm:$0xff]
    %v301 = vld [vmem:[#allocation6 + $0x588] sm:$0xff]
    %v302 = vld [vmem:[#allocation6 + $0x590] sm:$0xff]
    %v303 = vld [vmem:[#allocation6 + $0x598] sm:$0xff]
    %v304 = vld [vmem:[#allocation6 + $0x5a0] sm:$0xff]
    %v305 = vld [vmem:[#allocation6 + $0x5a8] sm:$0xff]
    %v306 = vld [vmem:[#allocation6 + $0x5b0] sm:$0xff]
    %v307 = vld [vmem:[#allocation6 + $0x5b8] sm:$0xff]
    %v308 = vld [vmem:[#allocation6 + $0x5c0] sm:$0xff]
    %v309 = vld [vmem:[#allocation6 + $0x5c8] sm:$0xff]
    %v310 = vld [vmem:[#allocation6 + $0x5d0] sm:$0xff]
    %v311 = vld [vmem:[#allocation6 + $0x5d8] sm:$0xff]
    %v312 = vld [vmem:[#allocation6 + $0x5e0] sm:$0xff]
    %v313 = vld [vmem:[#allocation6 + $0x5e8] sm:$0xff]
    %v314 = vld [vmem:[#allocation6 + $0x5f0] sm:$0xff]
    %v315 = vld [vmem:[#allocation6 + $0x5f8] sm:$0xff]
    %v316 = vld [vmem:[#allocation6 + $0x600] sm:$0xff]
    %v317 = vld [vmem:[#allocation6 + $0x608] sm:$0xff]
    %v318 = vld [vmem:[#allocation6 + $0x610] sm:$0xff]
    %v319 = vld [vmem:[#allocation6 + $0x618] sm:$0xff]
    %v320 = vld [vmem:[#allocation6 + $0x620] sm:$0xff]
    %v321 = vld [vmem:[#allocation6 + $0x628] sm:$0xff]
    %v322 = vld [vmem:[#allocation6 + $0x630] sm:$0xff]
    %v323 = vld [vmem:[#allocation6 + $0x638] sm:$0xff]
    %v324 = vld [vmem:[#allocation6 + $0x640] sm:$0xff]
    %v325 = vld [vmem:[#allocation6 + $0x648] sm:$0xff]
    %v326 = vld [vmem:[#allocation6 + $0x650] sm:$0xff]
    %v327 = vld [vmem:[#allocation6 + $0x658] sm:$0xff]
    %v328 = vld [vmem:[#allocation6 + $0x660] sm:$0xff]
    %v329 = vld [vmem:[#allocation6 + $0x668] sm:$0xff]
    %v330 = vld [vmem:[#allocation6 + $0x670] sm:$0xff]
    %v331 = vld [vmem:[#allocation6 + $0x678] sm:$0xff]
    %v332 = vld [vmem:[#allocation6 + $0x680] sm:$0xff]
    %v333 = vld [vmem:[#allocation6 + $0x688] sm:$0xff]
    %v334 = vld [vmem:[#allocation6 + $0x690] sm:$0xff]
    %v335 = vld [vmem:[#allocation6 + $0x698] sm:$0xff]
    %v336 = vld [vmem:[#allocation6 + $0x6a0] sm:$0xff]
    %v337 = vld [vmem:[#allocation6 + $0x6a8] sm:$0xff]
    %v338 = vld [vmem:[#allocation6 + $0x6b0] sm:$0xff]
    %v339 = vld [vmem:[#allocation6 + $0x6b8] sm:$0xff]
    %v340 = vld [vmem:[#allocation6 + $0x6c0] sm:$0xff]
    %v341 = vld [vmem:[#allocation6 + $0x6c8] sm:$0xff]
    %v342 = vld [vmem:[#allocation6 + $0x6d0] sm:$0xff]
    %v343 = vld [vmem:[#allocation6 + $0x6d8] sm:$0xff]
    %v344 = vld [vmem:[#allocation6 + $0x6e0] sm:$0xff]
    %v345 = vld [vmem:[#allocation6 + $0x6e8] sm:$0xff]
    %v346 = vld [vmem:[#allocation6 + $0x6f0] sm:$0xff]
    %v347 = vld [vmem:[#allocation6 + $0x6f8] sm:$0xff]
    %v348 = vld [vmem:[#allocation6 + $0x700] sm:$0xff]
    %v349 = vld [vmem:[#allocation6 + $0x708] sm:$0xff]
    %v350 = vld [vmem:[#allocation6 + $0x710] sm:$0xff]
    %v351 = vld [vmem:[#allocation6 + $0x718] sm:$0xff]
    %v352 = vld [vmem:[#allocation6 + $0x720] sm:$0xff]
    %v353 = vld [vmem:[#allocation6 + $0x728] sm:$0xff]
    %v354 = vld [vmem:[#allocation6 + $0x730] sm:$0xff]
    %v355 = vld [vmem:[#allocation6 + $0x738] sm:$0xff]
    %v356 = vld [vmem:[#allocation6 + $0x740] sm:$0xff]
    %v357 = vld [vmem:[#allocation6 + $0x748] sm:$0xff]
    %v358 = vld [vmem:[#allocation6 + $0x750] sm:$0xff]
    %v359 = vld [vmem:[#allocation6 + $0x758] sm:$0xff]
    %v360 = vld [vmem:[#allocation6 + $0x760] sm:$0xff]
    %v361 = vld [vmem:[#allocation6 + $0x768] sm:$0xff]
    %v362 = vld [vmem:[#allocation6 + $0x770] sm:$0xff]
    %v363 = vld [vmem:[#allocation6 + $0x778] sm:$0xff]
    %v364 = vld [vmem:[#allocation6 + $0x780] sm:$0xff]
    %v365 = vld [vmem:[#allocation6 + $0x788] sm:$0xff]
    %v366 = vld [vmem:[#allocation6 + $0x790] sm:$0xff]
    %v367 = vld [vmem:[#allocation6 + $0x798] sm:$0xff]
    %v368 = vld [vmem:[#allocation6 + $0x7a0] sm:$0xff]
    %v369 = vld [vmem:[#allocation6 + $0x7a8] sm:$0xff]
    %v370 = vld [vmem:[#allocation6 + $0x7b0] sm:$0xff]
    %v371 = vld [vmem:[#allocation6 + $0x7b8] sm:$0xff]
    %v372 = vld [vmem:[#allocation6 + $0x7c0] sm:$0xff]
    %v373 = vld [vmem:[#allocation6 + $0x7c8] sm:$0xff]
    %v374 = vld [vmem:[#allocation6 + $0x7d0] sm:$0xff]
    %v375 = vld [vmem:[#allocation6 + $0x7d8] sm:$0xff]
    %v376 = vld [vmem:[#allocation6 + $0x7e0] sm:$0xff]
    %v377 = vld [vmem:[#allocation6 + $0x7e8] sm:$0xff]
    %v378 = vld [vmem:[#allocation6 + $0x7f0] sm:$0xff]
    %v379 = vld [vmem:[#allocation6 + $0x7f8] sm:$0xff]
    %v380 = vld [vmem:[#allocation6 + $0x800] sm:$0xff]
    %v381 = vld [vmem:[#allocation6 + $0x808] sm:$0xff]
    %v382 = vld [vmem:[#allocation6 + $0x810] sm:$0xff]
    %v383 = vld [vmem:[#allocation6 + $0x818] sm:$0xff]
    %v384 = vld [vmem:[#allocation6 + $0x820] sm:$0xff]
    %v385 = vld [vmem:[#allocation6 + $0x828] sm:$0xff]
    %v386 = vld [vmem:[#allocation6 + $0x830] sm:$0xff]
    %v387 = vld [vmem:[#allocation6 + $0x838] sm:$0xff]
    %v388 = vld [vmem:[#allocation6 + $0x840] sm:$0xff]
    %v389 = vld [vmem:[#allocation6 + $0x848] sm:$0xff]
    %v390 = vld [vmem:[#allocation6 + $0x850] sm:$0xff]
    %v391 = vld [vmem:[#allocation6 + $0x858] sm:$0xff]
    %v392 = vld [vmem:[#allocation6 + $0x860] sm:$0xff]
    %v393 = vld [vmem:[#allocation6 + $0x868] sm:$0xff]
    %v394 = vld [vmem:[#allocation6 + $0x870] sm:$0xff]
    %v395 = vld [vmem:[#allocation6 + $0x878] sm:$0xff]
    %v396 = vld [vmem:[#allocation6 + $0x880] sm:$0xff]
    %v397 = vld [vmem:[#allocation6 + $0x888] sm:$0xff]
    %v398 = vld [vmem:[#allocation6 + $0x890] sm:$0xff]
    %v399 = vld [vmem:[#allocation6 + $0x898] sm:$0xff]
    %v400 = vld [vmem:[#allocation6 + $0x8a0] sm:$0xff]
    %v401 = vld [vmem:[#allocation6 + $0x8a8] sm:$0xff]
    %v402 = vld [vmem:[#allocation6 + $0x8b0] sm:$0xff]
    %v403 = vld [vmem:[#allocation6 + $0x8b8] sm:$0xff]
    %v404 = vld [vmem:[#allocation6 + $0x8c0] sm:$0xff]
    %v405 = vld [vmem:[#allocation6 + $0x8c8] sm:$0xff]
    %v406 = vld [vmem:[#allocation6 + $0x8d0] sm:$0xff]
    %v407 = vld [vmem:[#allocation6 + $0x8d8] sm:$0xff]
    %v408 = vld [vmem:[#allocation6 + $0x8e0] sm:$0xff]
    %v409 = vld [vmem:[#allocation6 + $0x8e8] sm:$0xff]
    %v410 = vld [vmem:[#allocation6 + $0x8f0] sm:$0xff]
    %v411 = vld [vmem:[#allocation6 + $0x8f8] sm:$0xff]
    %v412 = vld [vmem:[#allocation6 + $0x900] sm:$0xff]
    %v413 = vld [vmem:[#allocation6 + $0x908] sm:$0xff]
    %v414 = vld [vmem:[#allocation6 + $0x910] sm:$0xff]
    %v415 = vld [vmem:[#allocation6 + $0x918] sm:$0xff]
    %v416 = vld [vmem:[#allocation6 + $0x920] sm:$0xff]
    %v417 = vld [vmem:[#allocation6 + $0x928] sm:$0xff]
    %v418 = vld [vmem:[#allocation6 + $0x930] sm:$0xff]
    %v419 = vld [vmem:[#allocation6 + $0x938] sm:$0xff]
    %v420 = vld [vmem:[#allocation6 + $0x940] sm:$0xff]
    %v421 = vld [vmem:[#allocation6 + $0x948] sm:$0xff]
    %v422 = vld [vmem:[#allocation6 + $0x950] sm:$0xff]
    %v423 = vld [vmem:[#allocation6 + $0x958] sm:$0xff]
    %v424 = vld [vmem:[#allocation6 + $0x960] sm:$0xff]
    %v425 = vld [vmem:[#allocation6 + $0x968] sm:$0xff]
    %v426 = vld [vmem:[#allocation6 + $0x970] sm:$0xff]
    %v427 = vld [vmem:[#allocation6 + $0x978] sm:$0xff]
    %v428 = vld [vmem:[#allocation6 + $0x980] sm:$0xff]
    %v429 = vld [vmem:[#allocation6 + $0x988] sm:$0xff]
    %v430 = vld [vmem:[#allocation6 + $0x990] sm:$0xff]
    %v431 = vld [vmem:[#allocation6 + $0x998] sm:$0xff]
    %v432 = vld [vmem:[#allocation6 + $0x9a0] sm:$0xff]
    %v433 = vld [vmem:[#allocation6 + $0x9a8] sm:$0xff]
    %v434 = vld [vmem:[#allocation6 + $0x9b0] sm:$0xff]
    %v435 = vld [vmem:[#allocation6 + $0x9b8] sm:$0xff]
    %v436 = vld [vmem:[#allocation6 + $0x9c0] sm:$0xff]
    %v437 = vld [vmem:[#allocation6 + $0x9c8] sm:$0xff]
    %v438 = vld [vmem:[#allocation6 + $0x9d0] sm:$0xff]
    %v439 = vld [vmem:[#allocation6 + $0x9d8] sm:$0xff]
    %v440 = vld [vmem:[#allocation6 + $0x9e0] sm:$0xff]
    %v441 = vld [vmem:[#allocation6 + $0x9e8] sm:$0xff]
    %v442 = vld [vmem:[#allocation6 + $0x9f0] sm:$0xff]
    %v443 = vld [vmem:[#allocation6 + $0x9f8] sm:$0xff]
    %v444 = vld [vmem:[#allocation6 + $0xa00] sm:$0xff]
    %v445 = vld [vmem:[#allocation6 + $0xa08] sm:$0xff]
    %v446 = vld [vmem:[#allocation6 + $0xa10] sm:$0xff]
    %v447 = vld [vmem:[#allocation6 + $0xa18] sm:$0xff]
    %v448 = vld [vmem:[#allocation6 + $0xa20] sm:$0xff]
    %v449 = vld [vmem:[#allocation6 + $0xa28] sm:$0xff]
    %v450 = vld [vmem:[#allocation6 + $0xa30] sm:$0xff]
    %v451 = vld [vmem:[#allocation6 + $0xa38] sm:$0xff]
    %v452 = vld [vmem:[#allocation6 + $0xa40] sm:$0xff]
    %v453 = vld [vmem:[#allocation6 + $0xa48] sm:$0xff]
    %v454 = vld [vmem:[#allocation6 + $0xa50] sm:$0xff]
    %v455 = vld [vmem:[#allocation6 + $0xa58] sm:$0xff]
    %v456 = vld [vmem:[#allocation6 + $0xa60] sm:$0xff]
    %v457 = vld [vmem:[#allocation6 + $0xa68] sm:$0xff]
    %v458 = vld [vmem:[#allocation6 + $0xa70] sm:$0xff]
    %v459 = vld [vmem:[#allocation6 + $0xa78] sm:$0xff]
    %v460 = vld [vmem:[#allocation6 + $0xa80] sm:$0xff]
    %v461 = vld [vmem:[#allocation6 + $0xa88] sm:$0xff]
    %v462 = vld [vmem:[#allocation6 + $0xa90] sm:$0xff]
    %v463 = vld [vmem:[#allocation6 + $0xa98] sm:$0xff]
    %v464 = vld [vmem:[#allocation6 + $0xaa0] sm:$0xff]
    %v465 = vld [vmem:[#allocation6 + $0xaa8] sm:$0xff]
    %v466 = vld [vmem:[#allocation6 + $0xab0] sm:$0xff]
    %v467 = vld [vmem:[#allocation6 + $0xab8] sm:$0xff]
    %v468 = vld [vmem:[#allocation6 + $0xac0] sm:$0xff]
    %v469 = vld [vmem:[#allocation6 + $0xac8] sm:$0xff]
    %v470 = vld [vmem:[#allocation6 + $0xad0] sm:$0xff]
    %v471 = vld [vmem:[#allocation6 + $0xad8] sm:$0xff]
    %v472 = vld [vmem:[#allocation6 + $0xae0] sm:$0xff]
    %v473 = vld [vmem:[#allocation6 + $0xae8] sm:$0xff]
    %v474 = vld [vmem:[#allocation6 + $0xaf0] sm:$0xff]
    %v475 = vld [vmem:[#allocation6 + $0xaf8] sm:$0xff]
    %v476 = vld [vmem:[#allocation6 + $0xb00] sm:$0xff]
    %v477 = vld [vmem:[#allocation6 + $0xb08] sm:$0xff]
    %v478 = vld [vmem:[#allocation6 + $0xb10] sm:$0xff]
    %v479 = vld [vmem:[#allocation6 + $0xb18] sm:$0xff]
    %v480 = vld [vmem:[#allocation6 + $0xb20] sm:$0xff]
    %v481 = vld [vmem:[#allocation6 + $0xb28] sm:$0xff]
    %v482 = vld [vmem:[#allocation6 + $0xb30] sm:$0xff]
    %v483 = vld [vmem:[#allocation6 + $0xb38] sm:$0xff]
    %v484 = vld [vmem:[#allocation6 + $0xb40] sm:$0xff]
    %v485 = vld [vmem:[#allocation6 + $0xb48] sm:$0xff]
    %v486 = vld [vmem:[#allocation6 + $0xb50] sm:$0xff]
    %v487 = vld [vmem:[#allocation6 + $0xb58] sm:$0xff]
    %v488 = vld [vmem:[#allocation6 + $0xb60] sm:$0xff]
    %v489 = vld [vmem:[#allocation6 + $0xb68] sm:$0xff]
    %v490 = vld [vmem:[#allocation6 + $0xb70] sm:$0xff]
    %v491 = vld [vmem:[#allocation6 + $0xb78] sm:$0xff]
    %v492 = vld [vmem:[#allocation6 + $0xb80] sm:$0xff]
    %v493 = vld [vmem:[#allocation6 + $0xb88] sm:$0xff]
    %v494 = vld [vmem:[#allocation6 + $0xb90] sm:$0xff]
    %v495 = vld [vmem:[#allocation6 + $0xb98] sm:$0xff]
    %v496 = vld [vmem:[#allocation6 + $0xba0] sm:$0xff]
    %v497 = vld [vmem:[#allocation6 + $0xba8] sm:$0xff]
    %v498 = vld [vmem:[#allocation6 + $0xbb0] sm:$0xff]
    %v499 = vld [vmem:[#allocation6 + $0xbb8] sm:$0xff]
    %v500 = vld [vmem:[#allocation6 + $0xbc0] sm:$0xff]
    %v501 = vld [vmem:[#allocation6 + $0xbc8] sm:$0xff]
    %v502 = vld [vmem:[#allocation6 + $0xbd0] sm:$0xff]
    %v503 = vld [vmem:[#allocation6 + $0xbd8] sm:$0xff]
    %v504 = vld [vmem:[#allocation6 + $0xbe0] sm:$0xff]
    %v505 = vld [vmem:[#allocation6 + $0xbe8] sm:$0xff]
    %v506 = vld [vmem:[#allocation6 + $0xbf0] sm:$0xff]
    %v507 = vld [vmem:[#allocation6 + $0xbf8] sm:$0xff]
    %v508 = vld [vmem:[#allocation6 + $0xc00] sm:$0xff]
    %v509 = vld [vmem:[#allocation6 + $0xc08] sm:$0xff]
    %v510 = vld [vmem:[#allocation6 + $0xc10] sm:$0xff]
    %v511 = vld [vmem:[#allocation6 + $0xc18] sm:$0xff]
    %v512 = vld [vmem:[#allocation6 + $0xc20] sm:$0xff]
    %v513 = vld [vmem:[#allocation6 + $0xc28] sm:$0xff]
    %v514 = vld [vmem:[#allocation6 + $0xc30] sm:$0xff]
    %v515 = vld [vmem:[#allocation6 + $0xc38] sm:$0xff]
    %v516 = vld [vmem:[#allocation6 + $0xc40] sm:$0xff]
    %v517 = vld [vmem:[#allocation6 + $0xc48] sm:$0xff]
    %v518 = vld [vmem:[#allocation6 + $0xc50] sm:$0xff]
    %v519 = vld [vmem:[#allocation6 + $0xc58] sm:$0xff]
    %v520 = vld [vmem:[#allocation6 + $0xc60] sm:$0xff]
    %v521 = vld [vmem:[#allocation6 + $0xc68] sm:$0xff]
    %v522 = vld [vmem:[#allocation6 + $0xc70] sm:$0xff]
    %v523 = vld [vmem:[#allocation6 + $0xc78] sm:$0xff]
    %v524 = vld [vmem:[#allocation6 + $0xc80] sm:$0xff]
    %v525 = vld [vmem:[#allocation6 + $0xc88] sm:$0xff]
    %v526 = vld [vmem:[#allocation6 + $0xc90] sm:$0xff]
    %v527 = vld [vmem:[#allocation6 + $0xc98] sm:$0xff]
    %v528 = vld [vmem:[#allocation6 + $0xca0] sm:$0xff]
    %v529 = vld [vmem:[#allocation6 + $0xca8] sm:$0xff]
    %v530 = vld [vmem:[#allocation6 + $0xcb0] sm:$0xff]
    %v531 = vld [vmem:[#allocation6 + $0xcb8] sm:$0xff]
    %v532 = vld [vmem:[#allocation6 + $0xcc0] sm:$0xff]
    %v533 = vld [vmem:[#allocation6 + $0xcc8] sm:$0xff]
    %v534 = vld [vmem:[#allocation6 + $0xcd0] sm:$0xff]
    %v535 = vld [vmem:[#allocation6 + $0xcd8] sm:$0xff]
    %v536 = vld [vmem:[#allocation6 + $0xce0] sm:$0xff]
    %v537 = vld [vmem:[#allocation6 + $0xce8] sm:$0xff]
    %v538 = vld [vmem:[#allocation6 + $0xcf0] sm:$0xff]
    %v539 = vld [vmem:[#allocation6 + $0xcf8] sm:$0xff]
    %v540 = vld [vmem:[#allocation6 + $0xd00] sm:$0xff]
    %v541 = vld [vmem:[#allocation6 + $0xd08] sm:$0xff]
    %v542 = vld [vmem:[#allocation6 + $0xd10] sm:$0xff]
    %v543 = vld [vmem:[#allocation6 + $0xd18] sm:$0xff]
    %v544 = vld [vmem:[#allocation6 + $0xd20] sm:$0xff]
    %v545 = vld [vmem:[#allocation6 + $0xd28] sm:$0xff]
    %v546 = vld [vmem:[#allocation6 + $0xd30] sm:$0xff]
    %v547 = vld [vmem:[#allocation6 + $0xd38] sm:$0xff]
    %v548 = vld [vmem:[#allocation6 + $0xd40] sm:$0xff]
    %v549 = vld [vmem:[#allocation6 + $0xd48] sm:$0xff]
    %v550 = vld [vmem:[#allocation6 + $0xd50] sm:$0xff]
    %v551 = vld [vmem:[#allocation6 + $0xd58] sm:$0xff]
    %v552 = vld [vmem:[#allocation6 + $0xd60] sm:$0xff]
    %v553 = vld [vmem:[#allocation6 + $0xd68] sm:$0xff]
    %v554 = vld [vmem:[#allocation6 + $0xd70] sm:$0xff]
    %v555 = vld [vmem:[#allocation6 + $0xd78] sm:$0xff]
    %v556 = vld [vmem:[#allocation6 + $0xd80] sm:$0xff]
    %v557 = vld [vmem:[#allocation6 + $0xd88] sm:$0xff]
    %v558 = vld [vmem:[#allocation6 + $0xd90] sm:$0xff]
    %v559 = vld [vmem:[#allocation6 + $0xd98] sm:$0xff]
    %v560 = vld [vmem:[#allocation6 + $0xda0] sm:$0xff]
    %v561 = vld [vmem:[#allocation6 + $0xda8] sm:$0xff]
    %v562 = vld [vmem:[#allocation6 + $0xdb0] sm:$0xff]
    %v563 = vld [vmem:[#allocation6 + $0xdb8] sm:$0xff]
    %v564 = vld [vmem:[#allocation6 + $0xdc0] sm:$0xff]
    %v565 = vld [vmem:[#allocation6 + $0xdc8] sm:$0xff]
    %v566 = vld [vmem:[#allocation6 + $0xdd0] sm:$0xff]
    %v567 = vld [vmem:[#allocation6 + $0xdd8] sm:$0xff]
    %v568 = vld [vmem:[#allocation6 + $0xde0] sm:$0xff]
    %v569 = vld [vmem:[#allocation6 + $0xde8] sm:$0xff]
    %v570 = vld [vmem:[#allocation6 + $0xdf0] sm:$0xff]
    %v571 = vld [vmem:[#allocation6 + $0xdf8] sm:$0xff]
    %v572 = vld [vmem:[#allocation6 + $0xe00] sm:$0xff]
    %v573 = vld [vmem:[#allocation6 + $0xe08] sm:$0xff]
    %v574 = vld [vmem:[#allocation6 + $0xe10] sm:$0xff]
    %v575 = vld [vmem:[#allocation6 + $0xe18] sm:$0xff]
    %v576 = vld [vmem:[#allocation6 + $0xe20] sm:$0xff]
    %v577 = vld [vmem:[#allocation6 + $0xe28] sm:$0xff]
    %v578 = vld [vmem:[#allocation6 + $0xe30] sm:$0xff]
    %v579 = vld [vmem:[#allocation6 + $0xe38] sm:$0xff]
    %v580 = vld [vmem:[#allocation6 + $0xe40] sm:$0xff]
    %v581 = vld [vmem:[#allocation6 + $0xe48] sm:$0xff]
    %v582 = vld [vmem:[#allocation6 + $0xe50] sm:$0xff]
    %v583 = vld [vmem:[#allocation6 + $0xe58] sm:$0xff]
    %v584 = vld [vmem:[#allocation6 + $0xe60] sm:$0xff]
    %v585 = vld [vmem:[#allocation6 + $0xe68] sm:$0xff]
    %v586 = vld [vmem:[#allocation6 + $0xe70] sm:$0xff]
    %v587 = vld [vmem:[#allocation6 + $0xe78] sm:$0xff]
    %v588 = vld [vmem:[#allocation6 + $0xe80] sm:$0xff]
    %v589 = vld [vmem:[#allocation6 + $0xe88] sm:$0xff]
    %v590 = vld [vmem:[#allocation6 + $0xe90] sm:$0xff]
    %v591 = vld [vmem:[#allocation6 + $0xe98] sm:$0xff]
    %v592 = vld [vmem:[#allocation6 + $0xea0] sm:$0xff]
    %v593 = vld [vmem:[#allocation6 + $0xea8] sm:$0xff]
    %v594 = vld [vmem:[#allocation6 + $0xeb0] sm:$0xff]
    %v595 = vld [vmem:[#allocation6 + $0xeb8] sm:$0xff]
    %v596 = vld [vmem:[#allocation6 + $0xec0] sm:$0xff]
    %v597 = vld [vmem:[#allocation6 + $0xec8] sm:$0xff]
    %v598 = vld [vmem:[#allocation6 + $0xed0] sm:$0xff]
    %v599 = vld [vmem:[#allocation6 + $0xed8] sm:$0xff]
    %v600 = vld [vmem:[#allocation6 + $0xee0] sm:$0xff]
    %v601 = vld [vmem:[#allocation6 + $0xee8] sm:$0xff]
    %v602 = vld [vmem:[#allocation6 + $0xef0] sm:$0xff]
    %v603 = vld [vmem:[#allocation6 + $0xef8] sm:$0xff]
    %v604 = vld [vmem:[#allocation6 + $0xf00] sm:$0xff]
    %v605 = vld [vmem:[#allocation6 + $0xf08] sm:$0xff]
    %v606 = vld [vmem:[#allocation6 + $0xf10] sm:$0xff]
    %v607 = vld [vmem:[#allocation6 + $0xf18] sm:$0xff]
    %v608 = vld [vmem:[#allocation6 + $0xf20] sm:$0xff]
    %v609 = vld [vmem:[#allocation6 + $0xf28] sm:$0xff]
    %v610 = vld [vmem:[#allocation6 + $0xf30] sm:$0xff]
    %v611 = vld [vmem:[#allocation6 + $0xf38] sm:$0xff]
    %v612 = vld [vmem:[#allocation6 + $0xf40] sm:$0xff]
    %v613 = vld [vmem:[#allocation6 + $0xf48] sm:$0xff]
    %v614 = vld [vmem:[#allocation6 + $0xf50] sm:$0xff]
    %v615 = vld [vmem:[#allocation6 + $0xf58] sm:$0xff]
    %v616 = vld [vmem:[#allocation6 + $0xf60] sm:$0xff]
    %v617 = vld [vmem:[#allocation6 + $0xf68] sm:$0xff]
    %v618 = vld [vmem:[#allocation6 + $0xf70] sm:$0xff]
    %v619 = vld [vmem:[#allocation6 + $0xf78] sm:$0xff]
    %v620 = vld [vmem:[#allocation6 + $0xf80] sm:$0xff]
    %v621 = vld [vmem:[#allocation6 + $0xf88] sm:$0xff]
    %v622 = vld [vmem:[#allocation6 + $0xf90] sm:$0xff]
    %v623 = vld [vmem:[#allocation6 + $0xf98] sm:$0xff]
    %v624 = vld [vmem:[#allocation6 + $0xfa0] sm:$0xff]
    %v625 = vld [vmem:[#allocation6 + $0xfa8] sm:$0xff]
    %v626 = vld [vmem:[#allocation6 + $0xfb0] sm:$0xff]
    %v627 = vld [vmem:[#allocation6 + $0xfb8] sm:$0xff]
    %v628 = vld [vmem:[#allocation6 + $0xfc0] sm:$0xff]
    %v629 = vld [vmem:[#allocation6 + $0xfc8] sm:$0xff]
    %v630 = vld [vmem:[#allocation6 + $0xfd0] sm:$0xff]
    %v631 = vld [vmem:[#allocation6 + $0xfd8] sm:$0xff]
    %v632 = vld [vmem:[#allocation6 + $0xfe0] sm:$0xff]
    %v633 = vld [vmem:[#allocation6 + $0xfe8] sm:$0xff]
    %v634 = vld [vmem:[#allocation6 + $0xff0] sm:$0xff]
    %v635 = vld [vmem:[#allocation6 + $0xff8] sm:$0xff]
    %636 = vmatprep.subr.mxu0 %v245
    %637 = vmatpush1.msra.mxu0 %v244
    %638 = vmatprep.subr.mxu0 %v237
    %639 = vmatpush1.msra.mxu0 %v236
    %640 = vmatprep.subr.mxu0 %v229
    %641 = vmatpush1.msra.mxu0 %v228
    %642 = vmatprep.subr.mxu0 %v221
    %643 = vmatpush1.msra.mxu0 %v220
    %644 = vmatprep.subr.mxu0 %v213
    %645 = vmatpush1.msra.mxu0 %v212
    %646 = vmatprep.subr.mxu0 %v205
    %647 = vmatpush1.msra.mxu0 %v204
    %648 = vmatprep.subr.mxu0 %v197
    %649 = vmatpush1.msra.mxu0 %v196
    %650 = vmatprep.subr.mxu0 %v189
    %651 = vmatpush1.msra.mxu0 %v188
    %652 = vmatprep.subr.mxu0 %v181
    %653 = vmatpush1.msra.mxu0 %v180
    %654 = vmatprep.subr.mxu0 %v173
    %655 = vmatpush1.msra.mxu0 %v172
    %656 = vmatprep.subr.mxu0 %v165
    %657 = vmatpush1.msra.mxu0 %v164
    %658 = vmatprep.subr.mxu0 %v157
    %659 = vmatpush1.msra.mxu0 %v156
    %660 = vmatprep.subr.mxu0 %v149
    %661 = vmatpush1.msra.mxu0 %v148
    %662 = vmatprep.subr.mxu0 %v141
    %663 = vmatpush1.msra.mxu0 %v140
    %664 = vmatprep.subr.mxu0 %v133
    %665 = vmatpush1.msra.mxu0 %v132
    %666 = vmatprep.subr.mxu0 %v125
    %667 = vmatpush1.msra.mxu0 %v124
    %668 = vmatprep.subr.mxu0 %v373
    %669 = vmatpush2.msra.mxu0 %v372
    %670 = vmatprep.subr.mxu0 %v365
    %671 = vmatpush2.msra.mxu0 %v364
    %672 = vmatprep.subr.mxu0 %v357
    %673 = vmatpush2.msra.mxu0 %v356
    %674 = vmatprep.subr.mxu0 %v349
    %675 = vmatpush2.msra.mxu0 %v348
    %676 = vmatprep.subr.mxu0 %v341
    %677 = vmatpush2.msra.mxu0 %v340
    %678 = vmatprep.subr.mxu0 %v333
    %679 = vmatpush2.msra.mxu0 %v332
    %680 = vmatprep.subr.mxu0 %v325
    %681 = vmatpush2.msra.mxu0 %v324
    %682 = vmatprep.subr.mxu0 %v317
    %683 = vmatpush2.msra.mxu0 %v316
    %684 = vmatprep.subr.mxu0 %v309
    %685 = vmatpush2.msra.mxu0 %v308
    %686 = vmatprep.subr.mxu0 %v301
    %687 = vmatpush2.msra.mxu0 %v300
    %688 = vmatprep.subr.mxu0 %v293
    %689 = vmatpush2.msra.mxu0 %v292
    %690 = vmatprep.subr.mxu0 %v285
    %691 = vmatpush2.msra.mxu0 %v284
    %692 = vmatprep.subr.mxu0 %v277
    %693 = vmatpush2.msra.mxu0 %v276
    %694 = vmatprep.subr.mxu0 %v269
    %695 = vmatpush2.msra.mxu0 %v268
    %696 = vmatprep.subr.mxu0 %v261
    %697 = vmatpush2.msra.mxu0 %v260
    %698 = vmatprep.subr.mxu0 %v253
    %699 = vmatpush2.msra.mxu0 %v252
    %700 = vmatprep.mubr.f32.mxu0 %v109
    %701 = vmatmul.mubr.f32.gmra.mxu0 %v108
    %v702 = vpop.f32.mrf.mxu0
    %v703 = vadd.f32 0.0, %v702
    %v704 = vpop.f32.mrf.mxu0
    %v705 = vadd.f32 0.0, %v704
    %706 = vmatprep.mubr.f32.mxu0 %v113
    %707 = vmatmul.mubr.f32.gmra.mxu0 %v112
    %v708 = vpop.f32.mrf.mxu0
    %v709 = vadd.f32 0.0, %v708
    %v710 = vpop.f32.mrf.mxu0
    %v711 = vadd.f32 0.0, %v710
    %712 = vmatprep.mubr.f32.mxu0 %v117
    %713 = vmatmul.mubr.f32.gmra.mxu0 %v116
    %v714 = vpop.f32.mrf.mxu0
    %v715 = vadd.f32 0.0, %v714
    %v716 = vpop.f32.mrf.mxu0
    %v717 = vadd.f32 0.0, %v716
    %718 = vmatprep.mubr.f32.mxu0 %v121
    %719 = vmatmul.mubr.f32.gmra.mxu0 %v120
    %v720 = vpop.f32.mrf.mxu0
    %v721 = vadd.f32 0.0, %v720
    %v722 = vpop.f32.mrf.mxu0
    %v723 = vadd.f32 0.0, %v722
    %724 = vdwg.mxu0
    %725 = vmatprep.subr.mxu0 %v501
    %726 = vmatpush1.msra.mxu0 %v500
    %727 = vmatprep.subr.mxu0 %v493
    %728 = vmatpush1.msra.mxu0 %v492
    %729 = vmatprep.subr.mxu0 %v485
    %730 = vmatpush1.msra.mxu0 %v484
    %731 = vmatprep.subr.mxu0 %v477
    %732 = vmatpush1.msra.mxu0 %v476
    %733 = vmatprep.subr.mxu0 %v469
    %734 = vmatpush1.msra.mxu0 %v468
    %735 = vmatprep.subr.mxu0 %v461
    %736 = vmatpush1.msra.mxu0 %v460
    %737 = vmatprep.subr.mxu0 %v453
    %738 = vmatpush1.msra.mxu0 %v452
    %739 = vmatprep.subr.mxu0 %v445
    %740 = vmatpush1.msra.mxu0 %v444
    %741 = vmatprep.subr.mxu0 %v437
    %742 = vmatpush1.msra.mxu0 %v436
    %743 = vmatprep.subr.mxu0 %v429
    %744 = vmatpush1.msra.mxu0 %v428
    %745 = vmatprep.subr.mxu0 %v421
    %746 = vmatpush1.msra.mxu0 %v420
    %747 = vmatprep.subr.mxu0 %v413
    %748 = vmatpush1.msra.mxu0 %v412
    %749 = vmatprep.subr.mxu0 %v405
    %750 = vmatpush1.msra.mxu0 %v404
    %751 = vmatprep.subr.mxu0 %v397
    %752 = vmatpush1.msra.mxu0 %v396
    %753 = vmatprep.subr.mxu0 %v389
    %754 = vmatpush1.msra.mxu0 %v388
    %755 = vmatprep.subr.mxu0 %v381
    %756 = vmatpush1.msra.mxu0 %v380
    %757 = vmatprep.subr.mxu0 %v629
    %758 = vmatpush2.msra.mxu0 %v628
    %759 = vmatprep.subr.mxu0 %v621
    %760 = vmatpush2.msra.mxu0 %v620
    %761 = vmatprep.subr.mxu0 %v613
    %762 = vmatpush2.msra.mxu0 %v612
    %763 = vmatprep.subr.mxu0 %v605
    %764 = vmatpush2.msra.mxu0 %v604
    %765 = vmatprep.subr.mxu0 %v597
    %766 = vmatpush2.msra.mxu0 %v596
    %767 = vmatprep.subr.mxu0 %v589
    %768 = vmatpush2.msra.mxu0 %v588
    %769 = vmatprep.subr.mxu0 %v581
    %770 = vmatpush2.msra.mxu0 %v580
    %771 = vmatprep.subr.mxu0 %v573
    %772 = vmatpush2.msra.mxu0 %v572
    %773 = vmatprep.subr.mxu0 %v565
    %774 = vmatpush2.msra.mxu0 %v564
    %775 = vmatprep.subr.mxu0 %v557
    %776 = vmatpush2.msra.mxu0 %v556
    %777 = vmatprep.subr.mxu0 %v549
    %778 = vmatpush2.msra.mxu0 %v548
    %779 = vmatprep.subr.mxu0 %v541
    %780 = vmatpush2.msra.mxu0 %v540
    %781 = vmatprep.subr.mxu0 %v533
    %782 = vmatpush2.msra.mxu0 %v532
    %783 = vmatprep.subr.mxu0 %v525
    %784 = vmatpush2.msra.mxu0 %v524
    %785 = vmatprep.subr.mxu0 %v517
    %786 = vmatpush2.msra.mxu0 %v516
    %787 = vmatprep.subr.mxu0 %v509
    %788 = vmatpush2.msra.mxu0 %v508
    %789 = vmatprep.mubr.f32.mxu0 %v111
    %790 = vmatmul.mubr.f32.gmra.mxu0 %v110
    %v791 = vpop.f32.mrf.mxu0
    %v792 = vadd.f32 %v703, %v791
    %v793 = vpop.f32.mrf.mxu0
    %v794 = vadd.f32 %v705, %v793
    %795 = vmatprep.mubr.f32.mxu0 %v115
    %796 = vmatmul.mubr.f32.gmra.mxu0 %v114
    %v797 = vpop.f32.mrf.mxu0
    %v798 = vadd.f32 %v709, %v797
    %v799 = vpop.f32.mrf.mxu0
    %v800 = vadd.f32 %v711, %v799
    %801 = vmatprep.mubr.f32.mxu0 %v119
    %802 = vmatmul.mubr.f32.gmra.mxu0 %v118
    %v803 = vpop.f32.mrf.mxu0
    %v804 = vadd.f32 %v715, %v803
    %v805 = vpop.f32.mrf.mxu0
    %v806 = vadd.f32 %v717, %v805
    %807 = vmatprep.mubr.f32.mxu0 %v123
    %808 = vmatmul.mubr.f32.gmra.mxu0 %v122
    %v809 = vpop.f32.mrf.mxu0
    %v810 = vadd.f32 %v721, %v809
    %v811 = vpop.f32.mrf.mxu0
    %v812 = vadd.f32 %v723, %v811
    %813 = vdwg.mxu0
    %814 = vmatprep.subr.mxu0 %v247
    %815 = vmatpush1.msra.mxu0 %v246
    %816 = vmatprep.subr.mxu0 %v239
    %817 = vmatpush1.msra.mxu0 %v238
    %818 = vmatprep.subr.mxu0 %v231
    %819 = vmatpush1.msra.mxu0 %v230
    %820 = vmatprep.subr.mxu0 %v223
    %821 = vmatpush1.msra.mxu0 %v222
    %822 = vmatprep.subr.mxu0 %v215
    %823 = vmatpush1.msra.mxu0 %v214
    %824 = vmatprep.subr.mxu0 %v207
    %825 = vmatpush1.msra.mxu0 %v206
    %826 = vmatprep.subr.mxu0 %v199
    %827 = vmatpush1.msra.mxu0 %v198
    %828 = vmatprep.subr.mxu0 %v191
    %829 = vmatpush1.msra.mxu0 %v190
    %830 = vmatprep.subr.mxu0 %v183
    %831 = vmatpush1.msra.mxu0 %v182
    %832 = vmatprep.subr.mxu0 %v175
    %833 = vmatpush1.msra.mxu0 %v174
    %834 = vmatprep.subr.mxu0 %v167
    %835 = vmatpush1.msra.mxu0 %v166
    %836 = vmatprep.subr.mxu0 %v159
    %837 = vmatpush1.msra.mxu0 %v158
    %838 = vmatprep.subr.mxu0 %v151
    %839 = vmatpush1.msra.mxu0 %v150
    %840 = vmatprep.subr.mxu0 %v143
    %841 = vmatpush1.msra.mxu0 %v142
    %842 = vmatprep.subr.mxu0 %v135
    %843 = vmatpush1.msra.mxu0 %v134
    %844 = vmatprep.subr.mxu0 %v127
    %845 = vmatpush1.msra.mxu0 %v126
    %846 = vmatprep.subr.mxu0 %v375
    %847 = vmatpush2.msra.mxu0 %v374
    %848 = vmatprep.subr.mxu0 %v367
    %849 = vmatpush2.msra.mxu0 %v366
    %850 = vmatprep.subr.mxu0 %v359
    %851 = vmatpush2.msra.mxu0 %v358
    %852 = vmatprep.subr.mxu0 %v351
    %853 = vmatpush2.msra.mxu0 %v350
    %854 = vmatprep.subr.mxu0 %v343
    %855 = vmatpush2.msra.mxu0 %v342
    %856 = vmatprep.subr.mxu0 %v335
    %857 = vmatpush2.msra.mxu0 %v334
    %858 = vmatprep.subr.mxu0 %v327
    %859 = vmatpush2.msra.mxu0 %v326
    %860 = vmatprep.subr.mxu0 %v319
    %861 = vmatpush2.msra.mxu0 %v318
    %862 = vmatprep.subr.mxu0 %v311
    %863 = vmatpush2.msra.mxu0 %v310
    %864 = vmatprep.subr.mxu0 %v303
    %865 = vmatpush2.msra.mxu0 %v302
    %866 = vmatprep.subr.mxu0 %v295
    %867 = vmatpush2.msra.mxu0 %v294
    %868 = vmatprep.subr.mxu0 %v287
    %869 = vmatpush2.msra.mxu0 %v286
    %870 = vmatprep.subr.mxu0 %v279
    %871 = vmatpush2.msra.mxu0 %v278
    %872 = vmatprep.subr.mxu0 %v271
    %873 = vmatpush2.msra.mxu0 %v270
    %874 = vmatprep.subr.mxu0 %v263
    %875 = vmatpush2.msra.mxu0 %v262
    %876 = vmatprep.subr.mxu0 %v255
    %877 = vmatpush2.msra.mxu0 %v254
    %878 = vmatprep.mubr.f32.mxu0 %v109
    %879 = vmatmul.mubr.f32.gmra.mxu0 %v108
    %v880 = vpop.f32.mrf.mxu0
    %v881 = vadd.f32 0.0, %v880
    %v882 = vpop.f32.mrf.mxu0
    %v883 = vadd.f32 0.0, %v882
    %884 = vmatprep.mubr.f32.mxu0 %v113
    %885 = vmatmul.mubr.f32.gmra.mxu0 %v112
    %v886 = vpop.f32.mrf.mxu0
    %v887 = vadd.f32 0.0, %v886
    %v888 = vpop.f32.mrf.mxu0
    %v889 = vadd.f32 0.0, %v888
    %890 = vmatprep.mubr.f32.mxu0 %v117
    %891 = vmatmul.mubr.f32.gmra.mxu0 %v116
    %v892 = vpop.f32.mrf.mxu0
    %v893 = vadd.f32 0.0, %v892
    %v894 = vpop.f32.mrf.mxu0
    %v895 = vadd.f32 0.0, %v894
    %896 = vmatprep.mubr.f32.mxu0 %v121
    %897 = vmatmul.mubr.f32.gmra.mxu0 %v120
    %v898 = vpop.f32.mrf.mxu0
    %v899 = vadd.f32 0.0, %v898
    %v900 = vpop.f32.mrf.mxu0
    %v901 = vadd.f32 0.0, %v900
    %902 = vdwg.mxu0
    %903 = vmatprep.subr.mxu0 %v503
    %904 = vmatpush1.msra.mxu0 %v502
    %905 = vmatprep.subr.mxu0 %v495
    %906 = vmatpush1.msra.mxu0 %v494
    %907 = vmatprep.subr.mxu0 %v487
    %908 = vmatpush1.msra.mxu0 %v486
    %909 = vmatprep.subr.mxu0 %v479
    %910 = vmatpush1.msra.mxu0 %v478
    %911 = vmatprep.subr.mxu0 %v471
    %912 = vmatpush1.msra.mxu0 %v470
    %913 = vmatprep.subr.mxu0 %v463
    %914 = vmatpush1.msra.mxu0 %v462
    %915 = vmatprep.subr.mxu0 %v455
    %916 = vmatpush1.msra.mxu0 %v454
    %917 = vmatprep.subr.mxu0 %v447
    %918 = vmatpush1.msra.mxu0 %v446
    %919 = vmatprep.subr.mxu0 %v439
    %920 = vmatpush1.msra.mxu0 %v438
    %921 = vmatprep.subr.mxu0 %v431
    %922 = vmatpush1.msra.mxu0 %v430
    %923 = vmatprep.subr.mxu0 %v423
    %924 = vmatpush1.msra.mxu0 %v422
    %925 = vmatprep.subr.mxu0 %v415
    %926 = vmatpush1.msra.mxu0 %v414
    %927 = vmatprep.subr.mxu0 %v407
    %928 = vmatpush1.msra.mxu0 %v406
    %929 = vmatprep.subr.mxu0 %v399
    %930 = vmatpush1.msra.mxu0 %v398
    %931 = vmatprep.subr.mxu0 %v391
    %932 = vmatpush1.msra.mxu0 %v390
    %933 = vmatprep.subr.mxu0 %v383
    %934 = vmatpush1.msra.mxu0 %v382
    %935 = vmatprep.subr.mxu0 %v631
    %936 = vmatpush2.msra.mxu0 %v630
    %937 = vmatprep.subr.mxu0 %v623
    %938 = vmatpush2.msra.mxu0 %v622
    %939 = vmatprep.subr.mxu0 %v615
    %940 = vmatpush2.msra.mxu0 %v614
    %941 = vmatprep.subr.mxu0 %v607
    %942 = vmatpush2.msra.mxu0 %v606
    %943 = vmatprep.subr.mxu0 %v599
    %944 = vmatpush2.msra.mxu0 %v598
    %945 = vmatprep.subr.mxu0 %v591
    %946 = vmatpush2.msra.mxu0 %v590
    %947 = vmatprep.subr.mxu0 %v583
    %948 = vmatpush2.msra.mxu0 %v582
    %949 = vmatprep.subr.mxu0 %v575
    %950 = vmatpush2.msra.mxu0 %v574
    %951 = vmatprep.subr.mxu0 %v567
    %952 = vmatpush2.msra.mxu0 %v566
    %953 = vmatprep.subr.mxu0 %v559
    %954 = vmatpush2.msra.mxu0 %v558
    %955 = vmatprep.subr.mxu0 %v551
    %956 = vmatpush2.msra.mxu0 %v550
    %957 = vmatprep.subr.mxu0 %v543
    %958 = vmatpush2.msra.mxu0 %v542
    %959 = vmatprep.subr.mxu0 %v535
    %960 = vmatpush2.msra.mxu0 %v534
    %961 = vmatprep.subr.mxu0 %v527
    %962 = vmatpush2.msra.mxu0 %v526
    %963 = vmatprep.subr.mxu0 %v519
    %964 = vmatpush2.msra.mxu0 %v518
    %965 = vmatprep.subr.mxu0 %v511
    %966 = vmatpush2.msra.mxu0 %v510
    %967 = vmatprep.mubr.f32.mxu0 %v111
    %968 = vmatmul.mubr.f32.gmra.mxu0 %v110
    %v969 = vpop.f32.mrf.mxu0
    %v970 = vadd.f32 %v881, %v969
    %v971 = vpop.f32.mrf.mxu0
    %v972 = vadd.f32 %v883, %v971
    %973 = vmatprep.mubr.f32.mxu0 %v115
    %974 = vmatmul.mubr.f32.gmra.mxu0 %v114
    %v975 = vpop.f32.mrf.mxu0
    %v976 = vadd.f32 %v887, %v975
    %v977 = vpop.f32.mrf.mxu0
    %v978 = vadd.f32 %v889, %v977
    %979 = vmatprep.mubr.f32.mxu0 %v119
    %980 = vmatmul.mubr.f32.gmra.mxu0 %v118
    %v981 = vpop.f32.mrf.mxu0
    %v982 = vadd.f32 %v893, %v981
    %v983 = vpop.f32.mrf.mxu0
    %v984 = vadd.f32 %v895, %v983
    %985 = vmatprep.mubr.f32.mxu0 %v123
    %986 = vmatmul.mubr.f32.gmra.mxu0 %v122
    %v987 = vpop.f32.mrf.mxu0
    %v988 = vadd.f32 %v899, %v987
    %v989 = vpop.f32.mrf.mxu0
    %v990 = vadd.f32 %v901, %v989
    %991 = vdwg.mxu0
    %992 = vmatprep.subr.mxu0 %v249
    %993 = vmatpush1.msra.mxu0 %v248
    %994 = vmatprep.subr.mxu0 %v241
    %995 = vmatpush1.msra.mxu0 %v240
    %996 = vmatprep.subr.mxu0 %v233
    %997 = vmatpush1.msra.mxu0 %v232
    %998 = vmatprep.subr.mxu0 %v225
    %999 = vmatpush1.msra.mxu0 %v224
    %1000 = vmatprep.subr.mxu0 %v217
    %1001 = vmatpush1.msra.mxu0 %v216
    %1002 = vmatprep.subr.mxu0 %v209
    %1003 = vmatpush1.msra.mxu0 %v208
    %1004 = vmatprep.subr.mxu0 %v201
    %1005 = vmatpush1.msra.mxu0 %v200
    %1006 = vmatprep.subr.mxu0 %v193
    %1007 = vmatpush1.msra.mxu0 %v192
    %1008 = vmatprep.subr.mxu0 %v185
    %1009 = vmatpush1.msra.mxu0 %v184
    %1010 = vmatprep.subr.mxu0 %v177
    %1011 = vmatpush1.msra.mxu0 %v176
    %1012 = vmatprep.subr.mxu0 %v169
    %1013 = vmatpush1.msra.mxu0 %v168
    %1014 = vmatprep.subr.mxu0 %v161
    %1015 = vmatpush1.msra.mxu0 %v160
    %1016 = vmatprep.subr.mxu0 %v153
    %1017 = vmatpush1.msra.mxu0 %v152
    %1018 = vmatprep.subr.mxu0 %v145
    %1019 = vmatpush1.msra.mxu0 %v144
    %1020 = vmatprep.subr.mxu0 %v137
    %1021 = vmatpush1.msra.mxu0 %v136
    %1022 = vmatprep.subr.mxu0 %v129
    %1023 = vmatpush1.msra.mxu0 %v128
    %1024 = vmatprep.subr.mxu0 %v377
    %1025 = vmatpush2.msra.mxu0 %v376
    %1026 = vmatprep.subr.mxu0 %v369
    %1027 = vmatpush2.msra.mxu0 %v368
    %1028 = vmatprep.subr.mxu0 %v361
    %1029 = vmatpush2.msra.mxu0 %v360
    %1030 = vmatprep.subr.mxu0 %v353
    %1031 = vmatpush2.msra.mxu0 %v352
    %1032 = vmatprep.subr.mxu0 %v345
    %1033 = vmatpush2.msra.mxu0 %v344
    %1034 = vmatprep.subr.mxu0 %v337
    %1035 = vmatpush2.msra.mxu0 %v336
    %1036 = vmatprep.subr.mxu0 %v329
    %1037 = vmatpush2.msra.mxu0 %v328
    %1038 = vmatprep.subr.mxu0 %v321
    %1039 = vmatpush2.msra.mxu0 %v320
    %1040 = vmatprep.subr.mxu0 %v313
    %1041 = vmatpush2.msra.mxu0 %v312
    %1042 = vmatprep.subr.mxu0 %v305
    %1043 = vmatpush2.msra.mxu0 %v304
    %1044 = vmatprep.subr.mxu0 %v297
    %1045 = vmatpush2.msra.mxu0 %v296
    %1046 = vmatprep.subr.mxu0 %v289
    %1047 = vmatpush2.msra.mxu0 %v288
    %1048 = vmatprep.subr.mxu0 %v281
    %1049 = vmatpush2.msra.mxu0 %v280
    %1050 = vmatprep.subr.mxu0 %v273
    %1051 = vmatpush2.msra.mxu0 %v272
    %1052 = vmatprep.subr.mxu0 %v265
    %1053 = vmatpush2.msra.mxu0 %v264
    %1054 = vmatprep.subr.mxu0 %v257
    %1055 = vmatpush2.msra.mxu0 %v256
    %1056 = vmatprep.mubr.f32.mxu0 %v109
    %1057 = vmatmul.mubr.f32.gmra.mxu0 %v108
    %v1058 = vpop.f32.mrf.mxu0
    %v1059 = vadd.f32 0.0, %v1058
    %v1060 = vpop.f32.mrf.mxu0
    %v1061 = vadd.f32 0.0, %v1060
    %1062 = vmatprep.mubr.f32.mxu0 %v113
    %1063 = vmatmul.mubr.f32.gmra.mxu0 %v112
    %v1064 = vpop.f32.mrf.mxu0
    %v1065 = vadd.f32 0.0, %v1064
    %v1066 = vpop.f32.mrf.mxu0
    %v1067 = vadd.f32 0.0, %v1066
    %1068 = vmatprep.mubr.f32.mxu0 %v117
    %1069 = vmatmul.mubr.f32.gmra.mxu0 %v116
    %v1070 = vpop.f32.mrf.mxu0
    %v1071 = vadd.f32 0.0, %v1070
    %v1072 = vpop.f32.mrf.mxu0
    %v1073 = vadd.f32 0.0, %v1072
    %1074 = vmatprep.mubr.f32.mxu0 %v121
    %1075 = vmatmul.mubr.f32.gmra.mxu0 %v120
    %v1076 = vpop.f32.mrf.mxu0
    %v1077 = vadd.f32 0.0, %v1076
    %v1078 = vpop.f32.mrf.mxu0
    %v1079 = vadd.f32 0.0, %v1078
    %1080 = vdwg.mxu0
    %1081 = vmatprep.subr.mxu0 %v505
    %1082 = vmatpush1.msra.mxu0 %v504
    %1083 = vmatprep.subr.mxu0 %v497
    %1084 = vmatpush1.msra.mxu0 %v496
    %1085 = vmatprep.subr.mxu0 %v489
    %1086 = vmatpush1.msra.mxu0 %v488
    %1087 = vmatprep.subr.mxu0 %v481
    %1088 = vmatpush1.msra.mxu0 %v480
    %1089 = vmatprep.subr.mxu0 %v473
    %1090 = vmatpush1.msra.mxu0 %v472
    %1091 = vmatprep.subr.mxu0 %v465
    %1092 = vmatpush1.msra.mxu0 %v464
    %1093 = vmatprep.subr.mxu0 %v457
    %1094 = vmatpush1.msra.mxu0 %v456
    %1095 = vmatprep.subr.mxu0 %v449
    %1096 = vmatpush1.msra.mxu0 %v448
    %1097 = vmatprep.subr.mxu0 %v441
    %1098 = vmatpush1.msra.mxu0 %v440
    %1099 = vmatprep.subr.mxu0 %v433
    %1100 = vmatpush1.msra.mxu0 %v432
    %1101 = vmatprep.subr.mxu0 %v425
    %1102 = vmatpush1.msra.mxu0 %v424
    %1103 = vmatprep.subr.mxu0 %v417
    %1104 = vmatpush1.msra.mxu0 %v416
    %1105 = vmatprep.subr.mxu0 %v409
    %1106 = vmatpush1.msra.mxu0 %v408
    %1107 = vmatprep.subr.mxu0 %v401
    %1108 = vmatpush1.msra.mxu0 %v400
    %1109 = vmatprep.subr.mxu0 %v393
    %1110 = vmatpush1.msra.mxu0 %v392
    %1111 = vmatprep.subr.mxu0 %v385
    %1112 = vmatpush1.msra.mxu0 %v384
    %1113 = vmatprep.subr.mxu0 %v633
    %1114 = vmatpush2.msra.mxu0 %v632
    %1115 = vmatprep.subr.mxu0 %v625
    %1116 = vmatpush2.msra.mxu0 %v624
    %1117 = vmatprep.subr.mxu0 %v617
    %1118 = vmatpush2.msra.mxu0 %v616
    %1119 = vmatprep.subr.mxu0 %v609
    %1120 = vmatpush2.msra.mxu0 %v608
    %1121 = vmatprep.subr.mxu0 %v601
    %1122 = vmatpush2.msra.mxu0 %v600
    %1123 = vmatprep.subr.mxu0 %v593
    %1124 = vmatpush2.msra.mxu0 %v592
    %1125 = vmatprep.subr.mxu0 %v585
    %1126 = vmatpush2.msra.mxu0 %v584
    %1127 = vmatprep.subr.mxu0 %v577
    %1128 = vmatpush2.msra.mxu0 %v576
    %1129 = vmatprep.subr.mxu0 %v569
    %1130 = vmatpush2.msra.mxu0 %v568
    %1131 = vmatprep.subr.mxu0 %v561
    %1132 = vmatpush2.msra.mxu0 %v560
    %1133 = vmatprep.subr.mxu0 %v553
    %1134 = vmatpush2.msra.mxu0 %v552
    %1135 = vmatprep.subr.mxu0 %v545
    %1136 = vmatpush2.msra.mxu0 %v544
    %1137 = vmatprep.subr.mxu0 %v537
    %1138 = vmatpush2.msra.mxu0 %v536
    %1139 = vmatprep.subr.mxu0 %v529
    %1140 = vmatpush2.msra.mxu0 %v528
    %1141 = vmatprep.subr.mxu0 %v521
    %1142 = vmatpush2.msra.mxu0 %v520
    %1143 = vmatprep.subr.mxu0 %v513
    %1144 = vmatpush2.msra.mxu0 %v512
    %1145 = vmatprep.mubr.f32.mxu0 %v111
    %1146 = vmatmul.mubr.f32.gmra.mxu0 %v110
    %v1147 = vpop.f32.mrf.mxu0
    %v1148 = vadd.f32 %v1059, %v1147
    %v1149 = vpop.f32.mrf.mxu0
    %v1150 = vadd.f32 %v1061, %v1149
    %1151 = vmatprep.mubr.f32.mxu0 %v115
    %1152 = vmatmul.mubr.f32.gmra.mxu0 %v114
    %v1153 = vpop.f32.mrf.mxu0
    %v1154 = vadd.f32 %v1065, %v1153
    %v1155 = vpop.f32.mrf.mxu0
    %v1156 = vadd.f32 %v1067, %v1155
    %1157 = vmatprep.mubr.f32.mxu0 %v119
    %1158 = vmatmul.mubr.f32.gmra.mxu0 %v118
    %v1159 = vpop.f32.mrf.mxu0
    %v1160 = vadd.f32 %v1071, %v1159
    %v1161 = vpop.f32.mrf.mxu0
    %v1162 = vadd.f32 %v1073, %v1161
    %1163 = vmatprep.mubr.f32.mxu0 %v123
    %1164 = vmatmul.mubr.f32.gmra.mxu0 %v122
    %v1165 = vpop.f32.mrf.mxu0
    %v1166 = vadd.f32 %v1077, %v1165
    %v1167 = vpop.f32.mrf.mxu0
    %v1168 = vadd.f32 %v1079, %v1167
    %1169 = vdwg.mxu0
    %1170 = vmatprep.subr.mxu0 %v251
    %1171 = vmatpush1.msra.mxu0 %v250
    %1172 = vmatprep.subr.mxu0 %v243
    %1173 = vmatpush1.msra.mxu0 %v242
    %1174 = vmatprep.subr.mxu0 %v235
    %1175 = vmatpush1.msra.mxu0 %v234
    %1176 = vmatprep.subr.mxu0 %v227
    %1177 = vmatpush1.msra.mxu0 %v226
    %1178 = vmatprep.subr.mxu0 %v219
    %1179 = vmatpush1.msra.mxu0 %v218
    %1180 = vmatprep.subr.mxu0 %v211
    %1181 = vmatpush1.msra.mxu0 %v210
    %1182 = vmatprep.subr.mxu0 %v203
    %1183 = vmatpush1.msra.mxu0 %v202
    %1184 = vmatprep.subr.mxu0 %v195
    %1185 = vmatpush1.msra.mxu0 %v194
    %1186 = vmatprep.subr.mxu0 %v187
    %1187 = vmatpush1.msra.mxu0 %v186
    %1188 = vmatprep.subr.mxu0 %v179
    %1189 = vmatpush1.msra.mxu0 %v178
    %1190 = vmatprep.subr.mxu0 %v171
    %1191 = vmatpush1.msra.mxu0 %v170
    %1192 = vmatprep.subr.mxu0 %v163
    %1193 = vmatpush1.msra.mxu0 %v162
    %1194 = vmatprep.subr.mxu0 %v155
    %1195 = vmatpush1.msra.mxu0 %v154
    %1196 = vmatprep.subr.mxu0 %v147
    %1197 = vmatpush1.msra.mxu0 %v146
    %1198 = vmatprep.subr.mxu0 %v139
    %1199 = vmatpush1.msra.mxu0 %v138
    %1200 = vmatprep.subr.mxu0 %v131
    %1201 = vmatpush1.msra.mxu0 %v130
    %1202 = vmatprep.subr.mxu0 %v379
    %1203 = vmatpush2.msra.mxu0 %v378
    %1204 = vmatprep.subr.mxu0 %v371
    %1205 = vmatpush2.msra.mxu0 %v370
    %1206 = vmatprep.subr.mxu0 %v363
    %1207 = vmatpush2.msra.mxu0 %v362
    %1208 = vmatprep.subr.mxu0 %v355
    %1209 = vmatpush2.msra.mxu0 %v354
    %1210 = vmatprep.subr.mxu0 %v347
    %1211 = vmatpush2.msra.mxu0 %v346
    %1212 = vmatprep.subr.mxu0 %v339
    %1213 = vmatpush2.msra.mxu0 %v338
    %1214 = vmatprep.subr.mxu0 %v331
    %1215 = vmatpush2.msra.mxu0 %v330
    %1216 = vmatprep.subr.mxu0 %v323
    %1217 = vmatpush2.msra.mxu0 %v322
    %1218 = vmatprep.subr.mxu0 %v315
    %1219 = vmatpush2.msra.mxu0 %v314
    %1220 = vmatprep.subr.mxu0 %v307
    %1221 = vmatpush2.msra.mxu0 %v306
    %1222 = vmatprep.subr.mxu0 %v299
    %1223 = vmatpush2.msra.mxu0 %v298
    %1224 = vmatprep.subr.mxu0 %v291
    %1225 = vmatpush2.msra.mxu0 %v290
    %1226 = vmatprep.subr.mxu0 %v283
    %1227 = vmatpush2.msra.mxu0 %v282
    %1228 = vmatprep.subr.mxu0 %v275
    %1229 = vmatpush2.msra.mxu0 %v274
    %1230 = vmatprep.subr.mxu0 %v267
    %1231 = vmatpush2.msra.mxu0 %v266
    %1232 = vmatprep.subr.mxu0 %v259
    %1233 = vmatpush2.msra.mxu0 %v258
    %1234 = vmatprep.mubr.f32.mxu0 %v109
    %1235 = vmatmul.mubr.f32.gmra.mxu0 %v108
    %v1236 = vpop.f32.mrf.mxu0
    %v1237 = vadd.f32 0.0, %v1236
    %v1238 = vpop.f32.mrf.mxu0
    %v1239 = vadd.f32 0.0, %v1238
    %1240 = vmatprep.mubr.f32.mxu0 %v113
    %1241 = vmatmul.mubr.f32.gmra.mxu0 %v112
    %v1242 = vpop.f32.mrf.mxu0
    %v1243 = vadd.f32 0.0, %v1242
    %v1244 = vpop.f32.mrf.mxu0
    %v1245 = vadd.f32 0.0, %v1244
    %1246 = vmatprep.mubr.f32.mxu0 %v117
    %1247 = vmatmul.mubr.f32.gmra.mxu0 %v116
    %v1248 = vpop.f32.mrf.mxu0
    %v1249 = vadd.f32 0.0, %v1248
    %v1250 = vpop.f32.mrf.mxu0
    %v1251 = vadd.f32 0.0, %v1250
    %1252 = vmatprep.mubr.f32.mxu0 %v121
    %1253 = vmatmul.mubr.f32.gmra.mxu0 %v120
    %v1254 = vpop.f32.mrf.mxu0
    %v1255 = vadd.f32 0.0, %v1254
    %v1256 = vpop.f32.mrf.mxu0
    %v1257 = vadd.f32 0.0, %v1256
    %1258 = vdwg.mxu0
    %1259 = vmatprep.subr.mxu0 %v507
    %1260 = vmatpush1.msra.mxu0 %v506
    %1261 = vmatprep.subr.mxu0 %v499
    %1262 = vmatpush1.msra.mxu0 %v498
    %1263 = vmatprep.subr.mxu0 %v491
    %1264 = vmatpush1.msra.mxu0 %v490
    %1265 = vmatprep.subr.mxu0 %v483
    %1266 = vmatpush1.msra.mxu0 %v482
    %1267 = vmatprep.subr.mxu0 %v475
    %1268 = vmatpush1.msra.mxu0 %v474
    %1269 = vmatprep.subr.mxu0 %v467
    %1270 = vmatpush1.msra.mxu0 %v466
    %1271 = vmatprep.subr.mxu0 %v459
    %1272 = vmatpush1.msra.mxu0 %v458
    %1273 = vmatprep.subr.mxu0 %v451
    %1274 = vmatpush1.msra.mxu0 %v450
    %1275 = vmatprep.subr.mxu0 %v443
    %1276 = vmatpush1.msra.mxu0 %v442
    %1277 = vmatprep.subr.mxu0 %v435
    %1278 = vmatpush1.msra.mxu0 %v434
    %1279 = vmatprep.subr.mxu0 %v427
    %1280 = vmatpush1.msra.mxu0 %v426
    %1281 = vmatprep.subr.mxu0 %v419
    %1282 = vmatpush1.msra.mxu0 %v418
    %1283 = vmatprep.subr.mxu0 %v411
    %1284 = vmatpush1.msra.mxu0 %v410
    %1285 = vmatprep.subr.mxu0 %v403
    %1286 = vmatpush1.msra.mxu0 %v402
    %1287 = vmatprep.subr.mxu0 %v395
    %1288 = vmatpush1.msra.mxu0 %v394
    %1289 = vmatprep.subr.mxu0 %v387
    %1290 = vmatpush1.msra.mxu0 %v386
    %1291 = vmatprep.subr.mxu0 %v635
    %1292 = vmatpush2.msra.mxu0 %v634
    %1293 = vmatprep.subr.mxu0 %v627
    %1294 = vmatpush2.msra.mxu0 %v626
    %1295 = vmatprep.subr.mxu0 %v619
    %1296 = vmatpush2.msra.mxu0 %v618
    %1297 = vmatprep.subr.mxu0 %v611
    %1298 = vmatpush2.msra.mxu0 %v610
    %1299 = vmatprep.subr.mxu0 %v603
    %1300 = vmatpush2.msra.mxu0 %v602
    %1301 = vmatprep.subr.mxu0 %v595
    %1302 = vmatpush2.msra.mxu0 %v594
    %1303 = vmatprep.subr.mxu0 %v587
    %1304 = vmatpush2.msra.mxu0 %v586
    %1305 = vmatprep.subr.mxu0 %v579
    %1306 = vmatpush2.msra.mxu0 %v578
    %1307 = vmatprep.subr.mxu0 %v571
    %1308 = vmatpush2.msra.mxu0 %v570
    %1309 = vmatprep.subr.mxu0 %v563
    %1310 = vmatpush2.msra.mxu0 %v562
    %1311 = vmatprep.subr.mxu0 %v555
    %1312 = vmatpush2.msra.mxu0 %v554
    %1313 = vmatprep.subr.mxu0 %v547
    %1314 = vmatpush2.msra.mxu0 %v546
    %1315 = vmatprep.subr.mxu0 %v539
    %1316 = vmatpush2.msra.mxu0 %v538
    %1317 = vmatprep.subr.mxu0 %v531
    %1318 = vmatpush2.msra.mxu0 %v530
    %1319 = vmatprep.subr.mxu0 %v523
    %1320 = vmatpush2.msra.mxu0 %v522
    %1321 = vmatprep.subr.mxu0 %v515
    %1322 = vmatpush2.msra.mxu0 %v514
    %1323 = vmatprep.mubr.f32.mxu0 %v111
    %1324 = vmatmul.mubr.f32.gmra.mxu0 %v110
    %v1325 = vpop.f32.mrf.mxu0
    %v1326 = vadd.f32 %v1237, %v1325
    %v1327 = vpop.f32.mrf.mxu0
    %v1328 = vadd.f32 %v1239, %v1327
    %1329 = vmatprep.mubr.f32.mxu0 %v115
    %1330 = vmatmul.mubr.f32.gmra.mxu0 %v114
    %v1331 = vpop.f32.mrf.mxu0
    %v1332 = vadd.f32 %v1243, %v1331
    %v1333 = vpop.f32.mrf.mxu0
    %v1334 = vadd.f32 %v1245, %v1333
    %1335 = vmatprep.mubr.f32.mxu0 %v119
    %1336 = vmatmul.mubr.f32.gmra.mxu0 %v118
    %v1337 = vpop.f32.mrf.mxu0
    %v1338 = vadd.f32 %v1249, %v1337
    %v1339 = vpop.f32.mrf.mxu0
    %v1340 = vadd.f32 %v1251, %v1339
    %1341 = vmatprep.mubr.f32.mxu0 %v123
    %1342 = vmatmul.mubr.f32.gmra.mxu0 %v122
    %v1343 = vpop.f32.mrf.mxu0
    %v1344 = vadd.f32 %v1255, %v1343
    %v1345 = vpop.f32.mrf.mxu0
    %v1346 = vadd.f32 %v1257, %v1345
    %1347 = vdwg.mxu0
    %v1348 = vadd.f32 %v76, %v792
    %v1349 = vadd.f32 %v77, %v794
    %v1350 = vadd.f32 %v78, %v970
    %v1351 = vadd.f32 %v79, %v972
    %v1352 = vadd.f32 %v80, %v1148
    %v1353 = vadd.f32 %v81, %v1150
    %v1354 = vadd.f32 %v82, %v1326
    %v1355 = vadd.f32 %v83, %v1328
    %v1356 = vadd.f32 %v84, %v798
    %v1357 = vadd.f32 %v85, %v800
    %v1358 = vadd.f32 %v86, %v976
    %v1359 = vadd.f32 %v87, %v978
    %v1360 = vadd.f32 %v88, %v1154
    %v1361 = vadd.f32 %v89, %v1156
    %v1362 = vadd.f32 %v90, %v1332
    %v1363 = vadd.f32 %v91, %v1334
    %v1364 = vadd.f32 %v92, %v804
    %v1365 = vadd.f32 %v93, %v806
    %v1366 = vadd.f32 %v94, %v982
    %v1367 = vadd.f32 %v95, %v984
    %v1368 = vadd.f32 %v96, %v1160
    %v1369 = vadd.f32 %v97, %v1162
    %v1370 = vadd.f32 %v98, %v1338
    %v1371 = vadd.f32 %v99, %v1340
    %v1372 = vadd.f32 %v100, %v810
    %v1373 = vadd.f32 %v101, %v812
    %v1374 = vadd.f32 %v102, %v988
    %v1375 = vadd.f32 %v103, %v990
    %v1376 = vadd.f32 %v104, %v1166
    %v1377 = vadd.f32 %v105, %v1168
    %v1378 = vadd.f32 %v106, %v1344
    %v1379 = vadd.f32 %v107, %v1346
    %1380 = vst [vmem:[#allocation2] sm:$0xff] %v1348
    %1381 = vst [vmem:[#allocation2 + $0x8] sm:$0xff] %v1349
    %1382 = vst [vmem:[#allocation2 + $0x10] sm:$0xff] %v1350
    %1383 = vst [vmem:[#allocation2 + $0x18] sm:$0xff] %v1351
    %1384 = vst [vmem:[#allocation2 + $0x20] sm:$0xff] %v1352
    %1385 = vst [vmem:[#allocation2 + $0x28] sm:$0xff] %v1353
    %1386 = vst [vmem:[#allocation2 + $0x30] sm:$0xff] %v1354
    %1387 = vst [vmem:[#allocation2 + $0x38] sm:$0xff] %v1355
    %1388 = vst [vmem:[#allocation2 + $0x40] sm:$0xff] %v1356
    %1389 = vst [vmem:[#allocation2 + $0x48] sm:$0xff] %v1357
    %1390 = vst [vmem:[#allocation2 + $0x50] sm:$0xff] %v1358
    %1391 = vst [vmem:[#allocation2 + $0x58] sm:$0xff] %v1359
    %1392 = vst [vmem:[#allocation2 + $0x60] sm:$0xff] %v1360
    %1393 = vst [vmem:[#allocation2 + $0x68] sm:$0xff] %v1361
    %1394 = vst [vmem:[#allocation2 + $0x70] sm:$0xff] %v1362
    %1395 = vst [vmem:[#allocation2 + $0x78] sm:$0xff] %v1363
    %1396 = vst [vmem:[#allocation2 + $0x80] sm:$0xff] %v1364
    %1397 = vst [vmem:[#allocation2 + $0x88] sm:$0xff] %v1365
    %1398 = vst [vmem:[#allocation2 + $0x90] sm:$0xff] %v1366
    %1399 = vst [vmem:[#allocation2 + $0x98] sm:$0xff] %v1367
    %1400 = vst [vmem:[#allocation2 + $0xa0] sm:$0xff] %v1368
    %1401 = vst [vmem:[#allocation2 + $0xa8] sm:$0xff] %v1369
    %1402 = vst [vmem:[#allocation2 + $0xb0] sm:$0xff] %v1370
    %1403 = vst [vmem:[#allocation2 + $0xb8] sm:$0xff] %v1371
    %1404 = vst [vmem:[#allocation2 + $0xc0] sm:$0xff] %v1372
    %1405 = vst [vmem:[#allocation2 + $0xc8] sm:$0xff] %v1373
    %1406 = vst [vmem:[#allocation2 + $0xd0] sm:$0xff] %v1374
    %1407 = vst [vmem:[#allocation2 + $0xd8] sm:$0xff] %v1375
    %1408 = vst [vmem:[#allocation2 + $0xe0] sm:$0xff] %v1376
    %1409 = vst [vmem:[#allocation2 + $0xe8] sm:$0xff] %v1377
    %1410 = vst [vmem:[#allocation2 + $0xf0] sm:$0xff] %v1378
    %1411 = vst [vmem:[#allocation2 + $0xf8] sm:$0xff] %v1379
    // Predicated region
    $region22: #{tpu_custom_call.1} parent=1 // pred_check
      %p1412 = pneg %p40
    $region23: #{tpu_custom_call.1} parent=1 // pred_check_branch
      %1414 = sbr.rel (%p1412) target = $region25
    $region24: #{tpu_custom_call.1} parent=1 // pred_region
      %v1415 = vld [vmem:[#allocation2] sm:$0xff]
      %v1416 = vld [vmem:[#allocation2 + $0x8] sm:$0xff]
      %v1417 = vld [vmem:[#allocation2 + $0x10] sm:$0xff]
      %v1418 = vld [vmem:[#allocation2 + $0x18] sm:$0xff]
      %v1419 = vld [vmem:[#allocation2 + $0x20] sm:$0xff]
      %v1420 = vld [vmem:[#allocation2 + $0x28] sm:$0xff]
      %v1421 = vld [vmem:[#allocation2 + $0x30] sm:$0xff]
      %v1422 = vld [vmem:[#allocation2 + $0x38] sm:$0xff]
      %v1423 = vld [vmem:[#allocation2 + $0x40] sm:$0xff]
      %v1424 = vld [vmem:[#allocation2 + $0x48] sm:$0xff]
      %v1425 = vld [vmem:[#allocation2 + $0x50] sm:$0xff]
      %v1426 = vld [vmem:[#allocation2 + $0x58] sm:$0xff]
      %v1427 = vld [vmem:[#allocation2 + $0x60] sm:$0xff]
      %v1428 = vld [vmem:[#allocation2 + $0x68] sm:$0xff]
      %v1429 = vld [vmem:[#allocation2 + $0x70] sm:$0xff]
      %v1430 = vld [vmem:[#allocation2 + $0x78] sm:$0xff]
      %v1431 = vld [vmem:[#allocation2 + $0x80] sm:$0xff]
      %v1432 = vld [vmem:[#allocation2 + $0x88] sm:$0xff]
      %v1433 = vld [vmem:[#allocation2 + $0x90] sm:$0xff]
      %v1434 = vld [vmem:[#allocation2 + $0x98] sm:$0xff]
      %v1435 = vld [vmem:[#allocation2 + $0xa0] sm:$0xff]
      %v1436 = vld [vmem:[#allocation2 + $0xa8] sm:$0xff]
      %v1437 = vld [vmem:[#allocation2 + $0xb0] sm:$0xff]
      %v1438 = vld [vmem:[#allocation2 + $0xb8] sm:$0xff]
      %v1439 = vld [vmem:[#allocation2 + $0xc0] sm:$0xff]
      %v1440 = vld [vmem:[#allocation2 + $0xc8] sm:$0xff]
      %v1441 = vld [vmem:[#allocation2 + $0xd0] sm:$0xff]
      %v1442 = vld [vmem:[#allocation2 + $0xd8] sm:$0xff]
      %v1443 = vld [vmem:[#allocation2 + $0xe0] sm:$0xff]
      %v1444 = vld [vmem:[#allocation2 + $0xe8] sm:$0xff]
      %v1445 = vld [vmem:[#allocation2 + $0xf0] sm:$0xff]
      %v1446 = vld [vmem:[#allocation2 + $0xf8] sm:$0xff]
      %1447 = vst [vmem:[#allocation8] sm:$0xff] %v1415
      %1448 = vst [vmem:[#allocation8 + $0x8] sm:$0xff] %v1416
      %1449 = vst [vmem:[#allocation8 + $0x10] sm:$0xff] %v1417
      %1450 = vst [vmem:[#allocation8 + $0x18] sm:$0xff] %v1418
      %1451 = vst [vmem:[#allocation8 + $0x20] sm:$0xff] %v1419
      %1452 = vst [vmem:[#allocation8 + $0x28] sm:$0xff] %v1420
      %1453 = vst [vmem:[#allocation8 + $0x30] sm:$0xff] %v1421
      %1454 = vst [vmem:[#allocation8 + $0x38] sm:$0xff] %v1422
      %1455 = vst [vmem:[#allocation8 + $0x40] sm:$0xff] %v1423
      %1456 = vst [vmem:[#allocation8 + $0x48] sm:$0xff] %v1424
      %1457 = vst [vmem:[#allocation8 + $0x50] sm:$0xff] %v1425
      %1458 = vst [vmem:[#allocation8 + $0x58] sm:$0xff] %v1426
      %1459 = vst [vmem:[#allocation8 + $0x60] sm:$0xff] %v1427
      %1460 = vst [vmem:[#allocation8 + $0x68] sm:$0xff] %v1428
      %1461 = vst [vmem:[#allocation8 + $0x70] sm:$0xff] %v1429
      %1462 = vst [vmem:[#allocation8 + $0x78] sm:$0xff] %v1430
      %1463 = vst [vmem:[#allocation8 + $0x80] sm:$0xff] %v1431
      %1464 = vst [vmem:[#allocation8 + $0x88] sm:$0xff] %v1432
      %1465 = vst [vmem:[#allocation8 + $0x90] sm:$0xff] %v1433
      %1466 = vst [vmem:[#allocation8 + $0x98] sm:$0xff] %v1434
      %1467 = vst [vmem:[#allocation8 + $0xa0] sm:$0xff] %v1435
      %1468 = vst [vmem:[#allocation8 + $0xa8] sm:$0xff] %v1436
      %1469 = vst [vmem:[#allocation8 + $0xb0] sm:$0xff] %v1437
      %1470 = vst [vmem:[#allocation8 + $0xb8] sm:$0xff] %v1438
      %1471 = vst [vmem:[#allocation8 + $0xc0] sm:$0xff] %v1439
      %1472 = vst [vmem:[#allocation8 + $0xc8] sm:$0xff] %v1440
      %1473 = vst [vmem:[#allocation8 + $0xd0] sm:$0xff] %v1441
      %1474 = vst [vmem:[#allocation8 + $0xd8] sm:$0xff] %v1442
      %1475 = vst [vmem:[#allocation8 + $0xe0] sm:$0xff] %v1443
      %1476 = vst [vmem:[#allocation8 + $0xe8] sm:$0xff] %v1444
      %1477 = vst [vmem:[#allocation8 + $0xf0] sm:$0xff] %v1445
      %1478 = vst [vmem:[#allocation8 + $0xf8] sm:$0xff] %v1446
    $region25: #{tpu_custom_call.1} parent=1 // pred_fallthru
      _
    // Predicated region
    $region26: #{tpu_custom_call.1} parent=1 // pred_check
      _
    $region27: #{tpu_custom_call.1} parent=1 // pred_check_branch
      %1480 = sbr.rel (0) target = $region29
    $region28: #{tpu_custom_call.1} parent=1 // pred_region
      %s1482 = ssub.s32 4096, 4096
      %1483 = vsyncadd [#allocation5], %s1482
      %s1484 = sshll.u32 [#allocation8], 4
      %s1485 = int_to_ptr.vmem [resolvable:$true] %s1484
      %1490 = dma.vmem_to_hbm [thread:$0]  %s1485, 4096, %s2, [#allocation5], 1024, 1024, 64
    $region29: #{tpu_custom_call.1} parent=1 // pred_fallthru
      _
    // Predicated region
    $region30: #{tpu_custom_call.1} parent=1 // pred_check
      _
    $region31: #{tpu_custom_call.1} parent=1 // pred_check_branch
      %1492 = sbr.rel (0) target = $region33
    $region32: #{tpu_custom_call.1} parent=1 // pred_region
      %1493 = dma.done [#allocation5], 4096
    $region33: #{tpu_custom_call.1} parent=1 // pred_fallthru
      _
    %1494 = vsyncpa [#allocation4], 1
    %1495 = vsyncpa [#allocation7], 1
    %1496 = vsyncpa [#allocation5], 1

</llo_original>
